<compile_context>
chip_gen: v7x
topology: tpu7x:2x2x1
jax: 0.10.0
libtpu: 0.0.40
codegen_flags: <defaults>
</compile_context>

<pallas_src>
import jax
import jax.numpy as jnp
from jax import lax
from jax.experimental import pallas as pl
from jax.experimental.pallas import tpu as pltpu

# ----------------------------- model dimensions --------------------------------
B    = 2            # batch
N    = 8            # num notes (sequence length)
DN   = 32           # note embedding dim
DEV  = 8            # net_param.encoded_vector_size
DE   = 16           # net_param.encoder.size (performance_expandor output)
OUT  = 11           # net_param.output_size
HF   = 32           # net_param.final.size (LSTM hidden)
D_IN = DN + DE + OUT      # net_param.final.input (= 59)
OUT_PAD = 128             # lane-dense padded output width


# ================================ Pallas kernel =================================
def baseline_decoder_kernel(note_ref, perf_ref, w_pe_ref, b_pe_ref,
                            w_note_ref, w_perf_ref, b_step_ref,
                            w_comb_ref, w_fc_ref, b_fc_ref,
                            out_ref, xg_ref, h_all_ref):
    """note_ref: (N*B, DN) time-major notes; out_ref: (N*B, OUT_PAD) lane-dense."""
    n_rows, _ = out_ref.shape                    # N*B, OUT_PAD
    hidden = w_comb_ref.shape[0]
    n_batch = perf_ref.shape[0]
    n_notes = n_rows // n_batch

    # ---------------- hoisted, non-recurrent work (runs once) ------------------
    # performance_expandor Linear + its loop-invariant gate projection
    perf_e = (jnp.dot(perf_ref[...], w_pe_ref[...],
                      preferred_element_type=jnp.float32) + b_pe_ref[...])      # (B, DE)
    perf_g = jnp.dot(perf_e, w_perf_ref[...],
                     preferred_element_type=jnp.float32)                        # (B, 4H)
    # note-segment projection for ALL notes in one MXU pass
    note_g = jnp.dot(note_ref[...], w_note_ref[...],
                     preferred_element_type=jnp.float32)                        # (N*B, 4H)
    # per-step static gate contribution (biases + step>=1 prev_out bias folded)
    xg_ref[...] = note_g + b_step_ref[...]

    # hoist weight loads out of the recurrence
    w_comb = w_comb_ref[...]                                    # (HF, 4H) = W_hh + W_fc@W_prev

    # ---------------- sequential recurrence (fully unrolled, N static) ---------
    h = jnp.zeros((n_batch, hidden), jnp.float32)
    c = jnp.zeros((n_batch, hidden), jnp.float32)
    for i in range(n_notes):
        # ONE matmul on the per-step critical path; the xg[i] + perf_g adds are
        # independent of h and overlap with the MXU latency.
        gates = (xg_ref[i * n_batch:(i + 1) * n_batch, :] + perf_g
                 + jnp.dot(h, w_comb, preferred_element_type=jnp.float32))      # (B, 4H)
        i_g = jax.nn.sigmoid(gates[:, 0 * hidden:1 * hidden])
        f_g = jax.nn.sigmoid(gates[:, 1 * hidden:2 * hidden])
        g_g = jnp.tanh(gates[:, 2 * hidden:3 * hidden])
        o_g = jax.nn.sigmoid(gates[:, 3 * hidden:4 * hidden])
        c = f_g * c + i_g * g_g
        h = o_g * jnp.tanh(c)
        # stash h (off the critical path); fc is batched after the loop since the
        # prev_out feedback is already folded into w_comb / b_step.
        h_all_ref[i * n_batch:(i + 1) * n_batch, :] = h

    # ------------- one batched fc Linear + single lane-dense store -------------
    # padded lanes are exactly zero (zero-padded W_fc / b_fc) -> unmasked vst.
    out_ref[...] = (jnp.dot(h_all_ref[...], w_fc_ref[...],
                            preferred_element_type=jnp.float32) + b_fc_ref[...])


# ================================ wrapper (glue) ================================
def baseline_decoder_forward(params, score_embedding, perf_embedding,
                             res_info=None, edges=None, note_locations=None):
    note_emb = score_embedding['note']                              # (B, N, DN)
    n_batch, n_notes, d_note = note_emb.shape
    # time-major, 2-D layout so the hoisted note projection is a single matmul
    note_2d = jnp.transpose(note_emb, (1, 0, 2)).reshape(n_notes * n_batch, d_note)

    # ---- one-time parameter algebra (prev_out feedback folded into recurrence) ----
    hi = lax.Precision.HIGHEST
    w_comb  = params['w_hh'] + jnp.dot(params['w_fc'], params['w_prev'], precision=hi)
    b_extra = jnp.dot(params['b_fc'], params['w_prev'], precision=hi)           # (1, 4H)
    # rows of note 0 (i == 0) must NOT get the b_fc @ W_prev term (prev_out == 0 there)
    has_prev = (jnp.arange(n_notes * n_batch) >= n_batch).astype(jnp.float32)[:, None]
    b_step   = params['b_lstm'] + has_prev * b_extra                            # (N*B, 4H)
    # lane-dense fc weights (zero pad beyond OUT so padded output lanes are 0)
    w_fc_pad = jnp.pad(params['w_fc'], ((0, 0), (0, OUT_PAD - OUT)))
    b_fc_pad = jnp.pad(params['b_fc'], ((0, 0), (0, OUT_PAD - OUT)))

    vmem = pl.BlockSpec(memory_space=pltpu.MemorySpace.VMEM)
    out_pad = pl.pallas_call(
        baseline_decoder_kernel,
        out_shape=jax.ShapeDtypeStruct((n_notes * n_batch, OUT_PAD), jnp.float32),
        in_specs=[vmem] * 10,
        out_specs=vmem,
        scratch_shapes=[pltpu.VMEM((n_notes * n_batch, 4 * HF), jnp.float32),   # xg table
                        pltpu.VMEM((n_notes * n_batch, HF), jnp.float32)],      # h stash
    )(note_2d, perf_embedding, params['pe_w'], params['pe_b'],
      params['w_note'], params['w_perf'], b_step, w_comb, w_fc_pad, b_fc_pad)

    # back to (B, N, OUT) — layout plumbing only
    total_output = jnp.transpose(
        out_pad.reshape(n_notes, n_batch, OUT_PAD)[:, :, :OUT], (1, 0, 2))
    return total_output, []


# ===================== pure-JAX reference (PyTorch-equivalent) ==================
def baseline_decoder_reference(params, score_embedding, perf_embedding):
    note_emb = score_embedding['note']
    n_batch, n_notes, _ = note_emb.shape
    perf_e = perf_embedding @ params['pe_w'] + params['pe_b']
    h = jnp.zeros((n_batch, HF), jnp.float32)
    c = jnp.zeros((n_batch, HF), jnp.float32)
    prev = jnp.zeros((n_batch, OUT), jnp.float32)
    outs = []
    for i in range(n_notes):
        gates = (note_emb[:, i, :] @ params['w_note']
                 + perf_e @ params['w_perf']
                 + prev @ params['w_prev']
                 + h @ params['w_hh']
                 + params['b_lstm'])
        i_g = jax.nn.sigmoid(gates[:, :HF])
        f_g = jax.nn.sigmoid(gates[:, HF:2 * HF])
        g_g = jnp.tanh(gates[:, 2 * HF:3 * HF])
        o_g = jax.nn.sigmoid(gates[:, 3 * HF:])
        c = f_g * c + i_g * g_g
        h = o_g * jnp.tanh(c)
        prev = h @ params['w_fc'] + params['b_fc']
        outs.append(prev)
    return jnp.stack(outs, axis=1)                                  # (B, N, OUT)


# ============================ deterministic parameters ==========================
def init_params(key):
    def nrm(k, shape, scale=0.1):
        return scale * jax.random.normal(k, shape, jnp.float32)
    ks = jax.random.split(key, 9)
    # TODO(synk): nn.LSTM with net_param.final.layer > 1 (stacked layers +
    # inter-layer dropout) not implemented; a single LSTM layer is assumed.
    return {
        'pe_w':   nrm(ks[0], (DEV, DE)),            # performance_expandor
        'pe_b':   nrm(ks[1], (1, DE), 0.01),
        'w_note': nrm(ks[2], (DN, 4 * HF)),         # W_ih, note segment
        'w_perf': nrm(ks[3], (DE, 4 * HF)),         # W_ih, perf segment
        'w_prev': nrm(ks[4], (OUT, 4 * HF)),        # W_ih, prev_out segment
        'w_hh':   nrm(ks[5], (HF, 4 * HF)),         # W_hh
        'b_lstm': nrm(ks[6], (1, 4 * HF), 0.01),    # b_ih + b_hh combined
        'w_fc':   nrm(ks[7], (HF, OUT)),            # fc
        'b_fc':   nrm(ks[8], (1, OUT), 0.01),
    }


if __name__ == "__main__":
    root = jax.random.PRNGKey(0)
    kp, kd = jax.random.split(root)
    params = init_params(kp)

    k1, k2 = jax.random.split(kd)
    note_emb = 0.5 * jax.random.normal(k1, (B, N, DN), jnp.float32)
    perf_emb = 0.5 * jax.random.normal(k2, (B, DEV), jnp.float32)
    score_embedding = {'note': note_emb}

    fwd = jax.jit(baseline_decoder_forward)
    total_output, aux = fwd(params, score_embedding, perf_emb)
    total_output = jax.block_until_ready(total_output)

    assert total_output.shape == (B, N, OUT)
    assert bool(jnp.all(jnp.isfinite(total_output)))
    assert aux == []

    # numerical check against the straightforward (PyTorch-equivalent) recurrence
    with jax.default_matmul_precision("float32"):
        ref = baseline_decoder_reference(params, score_embedding, perf_emb)
    assert bool(jnp.allclose(total_output, ref, rtol=2e-2, atol=2e-2)), \
        float(jnp.max(jnp.abs(total_output - ref)))

    print("KERNEL_OK")
</pallas_src>

<mosaic_0001>
module attributes {stable_mosaic.version = 11 : i64} {
  func.func @baseline_decoder_kernel(%arg0: memref<16x32xf32, #tpu.memory_space<vmem>>, %arg1: memref<2x8xf32, #tpu.memory_space<vmem>>, %arg2: memref<8x16xf32, #tpu.memory_space<vmem>>, %arg3: memref<1x16xf32, #tpu.memory_space<vmem>>, %arg4: memref<32x128xf32, #tpu.memory_space<vmem>>, %arg5: memref<16x128xf32, #tpu.memory_space<vmem>>, %arg6: memref<16x128xf32, #tpu.memory_space<vmem>>, %arg7: memref<32x128xf32, #tpu.memory_space<vmem>>, %arg8: memref<32x128xf32, #tpu.memory_space<vmem>>, %arg9: memref<1x128xf32, #tpu.memory_space<vmem>>, %arg10: memref<16x128xf32, #tpu.memory_space<vmem>>, %arg11: memref<16x128xf32, #tpu.memory_space<vmem>>, %arg12: memref<16x32xf32, #tpu.memory_space<vmem>>) attributes {dimension_semantics = [], scalar_prefetch = 0 : i64, scratch_operands = 2 : i64, tpu.core_type = #tpu.core_type<tc>} {
    %c0 = arith.constant 0 : index
    %c0_0 = arith.constant 0 : index
    %0 = vector.load %arg1[%c0, %c0_0] : memref<2x8xf32, #tpu.memory_space<vmem>>, vector<2x8xf32>
    %c0_1 = arith.constant 0 : index
    %c0_2 = arith.constant 0 : index
    %1 = vector.load %arg2[%c0_1, %c0_2] : memref<8x16xf32, #tpu.memory_space<vmem>>, vector<8x16xf32>
    %cst = arith.constant dense<0.000000e+00> : vector<2x16xf32>
    %2 = tpu.matmul %0, %1, %cst {dimension_numbers = #tpu.dot_dimension_numbers<[1], [0], [0], [1], [0, 0, 1, 1], [], []>} : vector<2x8xf32>, vector<8x16xf32>, vector<2x16xf32> -> vector<2x16xf32>
    %c0_3 = arith.constant 0 : index
    %c0_4 = arith.constant 0 : index
    %3 = vector.load %arg3[%c0_3, %c0_4] : memref<1x16xf32, #tpu.memory_space<vmem>>, vector<1x16xf32>
    %4 = vector.broadcast %3 : vector<1x16xf32> to vector<2x16xf32>
    %5 = arith.addf %2, %4 : vector<2x16xf32>
    %c0_5 = arith.constant 0 : index
    %c0_6 = arith.constant 0 : index
    %6 = vector.load %arg5[%c0_5, %c0_6] : memref<16x128xf32, #tpu.memory_space<vmem>>, vector<16x128xf32>
    %cst_7 = arith.constant dense<0.000000e+00> : vector<2x128xf32>
    %7 = tpu.matmul %5, %6, %cst_7 {dimension_numbers = #tpu.dot_dimension_numbers<[1], [0], [0], [1], [0, 0, 1, 1], [], []>} : vector<2x16xf32>, vector<16x128xf32>, vector<2x128xf32> -> vector<2x128xf32>
    %c0_8 = arith.constant 0 : index
    %c0_9 = arith.constant 0 : index
    %8 = vector.load %arg0[%c0_8, %c0_9] : memref<16x32xf32, #tpu.memory_space<vmem>>, vector<16x32xf32>
    %c0_10 = arith.constant 0 : index
    %c0_11 = arith.constant 0 : index
    %9 = vector.load %arg4[%c0_10, %c0_11] : memref<32x128xf32, #tpu.memory_space<vmem>>, vector<32x128xf32>
    %cst_12 = arith.constant dense<0.000000e+00> : vector<16x128xf32>
    %10 = tpu.matmul %8, %9, %cst_12 {dimension_numbers = #tpu.dot_dimension_numbers<[1], [0], [0], [1], [0, 0, 1, 1], [], []>} : vector<16x32xf32>, vector<32x128xf32>, vector<16x128xf32> -> vector<16x128xf32>
    %c0_13 = arith.constant 0 : index
    %c0_14 = arith.constant 0 : index
    %11 = vector.load %arg6[%c0_13, %c0_14] : memref<16x128xf32, #tpu.memory_space<vmem>>, vector<16x128xf32>
    %12 = arith.addf %10, %11 : vector<16x128xf32>
    %c0_15 = arith.constant 0 : index
    %c0_16 = arith.constant 0 : index
    %13 = vector.load %arg11[%c0_15, %c0_16] : memref<16x128xf32, #tpu.memory_space<vmem>>, vector<16x128xf32>
    tpu.vector_store %arg11[%c0_15, %c0_16], %12 {strides = array<i32>} : memref<16x128xf32, #tpu.memory_space<vmem>>, vector<16x128xf32>,
    %c0_17 = arith.constant 0 : index
    %c0_18 = arith.constant 0 : index
    %14 = vector.load %arg7[%c0_17, %c0_18] : memref<32x128xf32, #tpu.memory_space<vmem>>, vector<32x128xf32>
    %cst_19 = arith.constant 0.000000e+00 : f32
    %15 = vector.broadcast %cst_19 : f32 to vector<2x32xf32>
    %cst_20 = arith.constant 0.000000e+00 : f32
    %16 = vector.broadcast %cst_20 : f32 to vector<2x32xf32>
    %c0_21 = arith.constant 0 : index
    %c0_22 = arith.constant 0 : index
    %17 = vector.load %arg11[%c0_21, %c0_22] : memref<16x128xf32, #tpu.memory_space<vmem>>, vector<2x128xf32>
    %18 = arith.addf %17, %7 : vector<2x128xf32>
    %cst_23 = arith.constant dense<0.000000e+00> : vector<2x128xf32>
    %19 = tpu.matmul %15, %14, %cst_23 {dimension_numbers = #tpu.dot_dimension_numbers<[1], [0], [0], [1], [0, 0, 1, 1], [], []>} : vector<2x32xf32>, vector<32x128xf32>, vector<2x128xf32> -> vector<2x128xf32>
    %20 = arith.addf %18, %19 : vector<2x128xf32>
    %21 = vector.extract_strided_slice %20 {offsets = [0, 0], sizes = [2, 32], strides = [1, 1]} : vector<2x128xf32> to vector<2x32xf32>
    %22 = arith.negf %21 : vector<2x32xf32>
    %23 = math.exp %22 : vector<2x32xf32>
    %cst_24 = arith.constant 1.000000e+00 : f32
    %24 = vector.broadcast %cst_24 : f32 to vector<2x32xf32>
    %25 = arith.addf %24, %23 : vector<2x32xf32>
    %26 = arith.divf %24, %25 : vector<2x32xf32>
    %27 = vector.extract_strided_slice %20 {offsets = [0, 32], sizes = [2, 32], strides = [1, 1]} : vector<2x128xf32> to vector<2x32xf32>
    %28 = arith.negf %27 : vector<2x32xf32>
    %29 = math.exp %28 : vector<2x32xf32>
    %cst_25 = arith.constant 1.000000e+00 : f32
    %30 = vector.broadcast %cst_25 : f32 to vector<2x32xf32>
    %31 = arith.addf %30, %29 : vector<2x32xf32>
    %32 = arith.divf %30, %31 : vector<2x32xf32>
    %33 = vector.extract_strided_slice %20 {offsets = [0, 64], sizes = [2, 32], strides = [1, 1]} : vector<2x128xf32> to vector<2x32xf32>
    %34 = math.tanh %33 : vector<2x32xf32>
    %35 = vector.extract_strided_slice %20 {offsets = [0, 96], sizes = [2, 32], strides = [1, 1]} : vector<2x128xf32> to vector<2x32xf32>
    %36 = arith.negf %35 : vector<2x32xf32>
    %37 = math.exp %36 : vector<2x32xf32>
    %cst_26 = arith.constant 1.000000e+00 : f32
    %38 = vector.broadcast %cst_26 : f32 to vector<2x32xf32>
    %39 = arith.addf %38, %37 : vector<2x32xf32>
    %40 = arith.divf %38, %39 : vector<2x32xf32>
    %41 = arith.mulf %32, %16 : vector<2x32xf32>
    %42 = arith.mulf %26, %34 : vector<2x32xf32>
    %43 = arith.addf %41, %42 : vector<2x32xf32>
    %44 = math.tanh %43 : vector<2x32xf32>
    %45 = arith.mulf %40, %44 : vector<2x32xf32>
    %c0_27 = arith.constant 0 : index
    %c0_28 = arith.constant 0 : index
    %46 = vector.load %arg12[%c0_27, %c0_28] : memref<16x32xf32, #tpu.memory_space<vmem>>, vector<2x32xf32>
    tpu.vector_store %arg12[%c0_27, %c0_28], %45 {strides = array<i32>} : memref<16x32xf32, #tpu.memory_space<vmem>>, vector<2x32xf32>,
    %c2 = arith.constant 2 : index
    %c0_29 = arith.constant 0 : index
    %47 = vector.load %arg11[%c2, %c0_29] : memref<16x128xf32, #tpu.memory_space<vmem>>, vector<2x128xf32>
    %48 = arith.addf %47, %7 : vector<2x128xf32>
    %cst_30 = arith.constant dense<0.000000e+00> : vector<2x128xf32>
    %49 = tpu.matmul %45, %14, %cst_30 {dimension_numbers = #tpu.dot_dimension_numbers<[1], [0], [0], [1], [0, 0, 1, 1], [], []>} : vector<2x32xf32>, vector<32x128xf32>, vector<2x128xf32> -> vector<2x128xf32>
    %50 = arith.addf %48, %49 : vector<2x128xf32>
    %51 = vector.extract_strided_slice %50 {offsets = [0, 0], sizes = [2, 32], strides = [1, 1]} : vector<2x128xf32> to vector<2x32xf32>
    %52 = arith.negf %51 : vector<2x32xf32>
    %53 = math.exp %52 : vector<2x32xf32>
    %cst_31 = arith.constant 1.000000e+00 : f32
    %54 = vector.broadcast %cst_31 : f32 to vector<2x32xf32>
    %55 = arith.addf %54, %53 : vector<2x32xf32>
    %56 = arith.divf %54, %55 : vector<2x32xf32>
    %57 = vector.extract_strided_slice %50 {offsets = [0, 32], sizes = [2, 32], strides = [1, 1]} : vector<2x128xf32> to vector<2x32xf32>
    %58 = arith.negf %57 : vector<2x32xf32>
    %59 = math.exp %58 : vector<2x32xf32>
    %cst_32 = arith.constant 1.000000e+00 : f32
    %60 = vector.broadcast %cst_32 : f32 to vector<2x32xf32>
    %61 = arith.addf %60, %59 : vector<2x32xf32>
    %62 = arith.divf %60, %61 : vector<2x32xf32>
    %63 = vector.extract_strided_slice %50 {offsets = [0, 64], sizes = [2, 32], strides = [1, 1]} : vector<2x128xf32> to vector<2x32xf32>
    %64 = math.tanh %63 : vector<2x32xf32>
    %65 = vector.extract_strided_slice %50 {offsets = [0, 96], sizes = [2, 32], strides = [1, 1]} : vector<2x128xf32> to vector<2x32xf32>
    %66 = arith.negf %65 : vector<2x32xf32>
    %67 = math.exp %66 : vector<2x32xf32>
    %cst_33 = arith.constant 1.000000e+00 : f32
    %68 = vector.broadcast %cst_33 : f32 to vector<2x32xf32>
    %69 = arith.addf %68, %67 : vector<2x32xf32>
    %70 = arith.divf %68, %69 : vector<2x32xf32>
    %71 = arith.mulf %62, %43 : vector<2x32xf32>
    %72 = arith.mulf %56, %64 : vector<2x32xf32>
    %73 = arith.addf %71, %72 : vector<2x32xf32>
    %74 = math.tanh %73 : vector<2x32xf32>
    %75 = arith.mulf %70, %74 : vector<2x32xf32>
    %c2_34 = arith.constant 2 : index
    %c0_35 = arith.constant 0 : index
    %76 = vector.load %arg12[%c2_34, %c0_35] : memref<16x32xf32, #tpu.memory_space<vmem>>, vector<2x32xf32>
    tpu.vector_store %arg12[%c2_34, %c0_35], %75 {strides = array<i32>} : memref<16x32xf32, #tpu.memory_space<vmem>>, vector<2x32xf32>,
    %c4 = arith.constant 4 : index
    %c0_36 = arith.constant 0 : index
    %77 = vector.load %arg11[%c4, %c0_36] : memref<16x128xf32, #tpu.memory_space<vmem>>, vector<2x128xf32>
    %78 = arith.addf %77, %7 : vector<2x128xf32>
    %cst_37 = arith.constant dense<0.000000e+00> : vector<2x128xf32>
    %79 = tpu.matmul %75, %14, %cst_37 {dimension_numbers = #tpu.dot_dimension_numbers<[1], [0], [0], [1], [0, 0, 1, 1], [], []>} : vector<2x32xf32>, vector<32x128xf32>, vector<2x128xf32> -> vector<2x128xf32>
    %80 = arith.addf %78, %79 : vector<2x128xf32>
    %81 = vector.extract_strided_slice %80 {offsets = [0, 0], sizes = [2, 32], strides = [1, 1]} : vector<2x128xf32> to vector<2x32xf32>
    %82 = arith.negf %81 : vector<2x32xf32>
    %83 = math.exp %82 : vector<2x32xf32>
    %cst_38 = arith.constant 1.000000e+00 : f32
    %84 = vector.broadcast %cst_38 : f32 to vector<2x32xf32>
    %85 = arith.addf %84, %83 : vector<2x32xf32>
    %86 = arith.divf %84, %85 : vector<2x32xf32>
    %87 = vector.extract_strided_slice %80 {offsets = [0, 32], sizes = [2, 32], strides = [1, 1]} : vector<2x128xf32> to vector<2x32xf32>
    %88 = arith.negf %87 : vector<2x32xf32>
    %89 = math.exp %88 : vector<2x32xf32>
    %cst_39 = arith.constant 1.000000e+00 : f32
    %90 = vector.broadcast %cst_39 : f32 to vector<2x32xf32>
    %91 = arith.addf %90, %89 : vector<2x32xf32>
    %92 = arith.divf %90, %91 : vector<2x32xf32>
    %93 = vector.extract_strided_slice %80 {offsets = [0, 64], sizes = [2, 32], strides = [1, 1]} : vector<2x128xf32> to vector<2x32xf32>
    %94 = math.tanh %93 : vector<2x32xf32>
    %95 = vector.extract_strided_slice %80 {offsets = [0, 96], sizes = [2, 32], strides = [1, 1]} : vector<2x128xf32> to vector<2x32xf32>
    %96 = arith.negf %95 : vector<2x32xf32>
    %97 = math.exp %96 : vector<2x32xf32>
    %cst_40 = arith.constant 1.000000e+00 : f32
    %98 = vector.broadcast %cst_40 : f32 to vector<2x32xf32>
    %99 = arith.addf %98, %97 : vector<2x32xf32>
    %100 = arith.divf %98, %99 : vector<2x32xf32>
    %101 = arith.mulf %92, %73 : vector<2x32xf32>
    %102 = arith.mulf %86, %94 : vector<2x32xf32>
    %103 = arith.addf %101, %102 : vector<2x32xf32>
    %104 = math.tanh %103 : vector<2x32xf32>
    %105 = arith.mulf %100, %104 : vector<2x32xf32>
    %c4_41 = arith.constant 4 : index
    %c0_42 = arith.constant 0 : index
    %106 = vector.load %arg12[%c4_41, %c0_42] : memref<16x32xf32, #tpu.memory_space<vmem>>, vector<2x32xf32>
    tpu.vector_store %arg12[%c4_41, %c0_42], %105 {strides = array<i32>} : memref<16x32xf32, #tpu.memory_space<vmem>>, vector<2x32xf32>,
    %c6 = arith.constant 6 : index
    %c0_43 = arith.constant 0 : index
    %107 = vector.load %arg11[%c6, %c0_43] : memref<16x128xf32, #tpu.memory_space<vmem>>, vector<2x128xf32>
    %108 = arith.addf %107, %7 : vector<2x128xf32>
    %cst_44 = arith.constant dense<0.000000e+00> : vector<2x128xf32>
    %109 = tpu.matmul %105, %14, %cst_44 {dimension_numbers = #tpu.dot_dimension_numbers<[1], [0], [0], [1], [0, 0, 1, 1], [], []>} : vector<2x32xf32>, vector<32x128xf32>, vector<2x128xf32> -> vector<2x128xf32>
    %110 = arith.addf %108, %109 : vector<2x128xf32>
    %111 = vector.extract_strided_slice %110 {offsets = [0, 0], sizes = [2, 32], strides = [1, 1]} : vector<2x128xf32> to vector<2x32xf32>
    %112 = arith.negf %111 : vector<2x32xf32>
    %113 = math.exp %112 : vector<2x32xf32>
    %cst_45 = arith.constant 1.000000e+00 : f32
    %114 = vector.broadcast %cst_45 : f32 to vector<2x32xf32>
    %115 = arith.addf %114, %113 : vector<2x32xf32>
    %116 = arith.divf %114, %115 : vector<2x32xf32>
    %117 = vector.extract_strided_slice %110 {offsets = [0, 32], sizes = [2, 32], strides = [1, 1]} : vector<2x128xf32> to vector<2x32xf32>
    %118 = arith.negf %117 : vector<2x32xf32>
    %119 = math.exp %118 : vector<2x32xf32>
    %cst_46 = arith.constant 1.000000e+00 : f32
    %120 = vector.broadcast %cst_46 : f32 to vector<2x32xf32>
    %121 = arith.addf %120, %119 : vector<2x32xf32>
    %122 = arith.divf %120, %121 : vector<2x32xf32>
    %123 = vector.extract_strided_slice %110 {offsets = [0, 64], sizes = [2, 32], strides = [1, 1]} : vector<2x128xf32> to vector<2x32xf32>
    %124 = math.tanh %123 : vector<2x32xf32>
    %125 = vector.extract_strided_slice %110 {offsets = [0, 96], sizes = [2, 32], strides = [1, 1]} : vector<2x128xf32> to vector<2x32xf32>
    %126 = arith.negf %125 : vector<2x32xf32>
    %127 = math.exp %126 : vector<2x32xf32>
    %cst_47 = arith.constant 1.000000e+00 : f32
    %128 = vector.broadcast %cst_47 : f32 to vector<2x32xf32>
    %129 = arith.addf %128, %127 : vector<2x32xf32>
    %130 = arith.divf %128, %129 : vector<2x32xf32>
    %131 = arith.mulf %122, %103 : vector<2x32xf32>
    %132 = arith.mulf %116, %124 : vector<2x32xf32>
    %133 = arith.addf %131, %132 : vector<2x32xf32>
    %134 = math.tanh %133 : vector<2x32xf32>
    %135 = arith.mulf %130, %134 : vector<2x32xf32>
    %c6_48 = arith.constant 6 : index
    %c0_49 = arith.constant 0 : index
    %136 = vector.load %arg12[%c6_48, %c0_49] : memref<16x32xf32, #tpu.memory_space<vmem>>, vector<2x32xf32>
    tpu.vector_store %arg12[%c6_48, %c0_49], %135 {strides = array<i32>} : memref<16x32xf32, #tpu.memory_space<vmem>>, vector<2x32xf32>,
    %c8 = arith.constant 8 : index
    %c0_50 = arith.constant 0 : index
    %137 = vector.load %arg11[%c8, %c0_50] : memref<16x128xf32, #tpu.memory_space<vmem>>, vector<2x128xf32>
    %138 = arith.addf %137, %7 : vector<2x128xf32>
    %cst_51 = arith.constant dense<0.000000e+00> : vector<2x128xf32>
    %139 = tpu.matmul %135, %14, %cst_51 {dimension_numbers = #tpu.dot_dimension_numbers<[1], [0], [0], [1], [0, 0, 1, 1], [], []>} : vector<2x32xf32>, vector<32x128xf32>, vector<2x128xf32> -> vector<2x128xf32>
    %140 = arith.addf %138, %139 : vector<2x128xf32>
    %141 = vector.extract_strided_slice %140 {offsets = [0, 0], sizes = [2, 32], strides = [1, 1]} : vector<2x128xf32> to vector<2x32xf32>
    %142 = arith.negf %141 : vector<2x32xf32>
    %143 = math.exp %142 : vector<2x32xf32>
    %cst_52 = arith.constant 1.000000e+00 : f32
    %144 = vector.broadcast %cst_52 : f32 to vector<2x32xf32>
    %145 = arith.addf %144, %143 : vector<2x32xf32>
    %146 = arith.divf %144, %145 : vector<2x32xf32>
    %147 = vector.extract_strided_slice %140 {offsets = [0, 32], sizes = [2, 32], strides = [1, 1]} : vector<2x128xf32> to vector<2x32xf32>
    %148 = arith.negf %147 : vector<2x32xf32>
    %149 = math.exp %148 : vector<2x32xf32>
    %cst_53 = arith.constant 1.000000e+00 : f32
    %150 = vector.broadcast %cst_53 : f32 to vector<2x32xf32>
    %151 = arith.addf %150, %149 : vector<2x32xf32>
    %152 = arith.divf %150, %151 : vector<2x32xf32>
    %153 = vector.extract_strided_slice %140 {offsets = [0, 64], sizes = [2, 32], strides = [1, 1]} : vector<2x128xf32> to vector<2x32xf32>
    %154 = math.tanh %153 : vector<2x32xf32>
    %155 = vector.extract_strided_slice %140 {offsets = [0, 96], sizes = [2, 32], strides = [1, 1]} : vector<2x128xf32> to vector<2x32xf32>
    %156 = arith.negf %155 : vector<2x32xf32>
    %157 = math.exp %156 : vector<2x32xf32>
    %cst_54 = arith.constant 1.000000e+00 : f32
    %158 = vector.broadcast %cst_54 : f32 to vector<2x32xf32>
    %159 = arith.addf %158, %157 : vector<2x32xf32>
    %160 = arith.divf %158, %159 : vector<2x32xf32>
    %161 = arith.mulf %152, %133 : vector<2x32xf32>
    %162 = arith.mulf %146, %154 : vector<2x32xf32>
    %163 = arith.addf %161, %162 : vector<2x32xf32>
    %164 = math.tanh %163 : vector<2x32xf32>
    %165 = arith.mulf %160, %164 : vector<2x32xf32>
    %c8_55 = arith.constant 8 : index
    %c0_56 = arith.constant 0 : index
    %166 = vector.load %arg12[%c8_55, %c0_56] : memref<16x32xf32, #tpu.memory_space<vmem>>, vector<2x32xf32>
    tpu.vector_store %arg12[%c8_55, %c0_56], %165 {strides = array<i32>} : memref<16x32xf32, #tpu.memory_space<vmem>>, vector<2x32xf32>,
    %c10 = arith.constant 10 : index
    %c0_57 = arith.constant 0 : index
    %167 = vector.load %arg11[%c10, %c0_57] : memref<16x128xf32, #tpu.memory_space<vmem>>, vector<2x128xf32>
    %168 = arith.addf %167, %7 : vector<2x128xf32>
    %cst_58 = arith.constant dense<0.000000e+00> : vector<2x128xf32>
    %169 = tpu.matmul %165, %14, %cst_58 {dimension_numbers = #tpu.dot_dimension_numbers<[1], [0], [0], [1], [0, 0, 1, 1], [], []>} : vector<2x32xf32>, vector<32x128xf32>, vector<2x128xf32> -> vector<2x128xf32>
    %170 = arith.addf %168, %169 : vector<2x128xf32>
    %171 = vector.extract_strided_slice %170 {offsets = [0, 0], sizes = [2, 32], strides = [1, 1]} : vector<2x128xf32> to vector<2x32xf32>
    %172 = arith.negf %171 : vector<2x32xf32>
    %173 = math.exp %172 : vector<2x32xf32>
    %cst_59 = arith.constant 1.000000e+00 : f32
    %174 = vector.broadcast %cst_59 : f32 to vector<2x32xf32>
    %175 = arith.addf %174, %173 : vector<2x32xf32>
    %176 = arith.divf %174, %175 : vector<2x32xf32>
    %177 = vector.extract_strided_slice %170 {offsets = [0, 32], sizes = [2, 32], strides = [1, 1]} : vector<2x128xf32> to vector<2x32xf32>
    %178 = arith.negf %177 : vector<2x32xf32>
    %179 = math.exp %178 : vector<2x32xf32>
    %cst_60 = arith.constant 1.000000e+00 : f32
    %180 = vector.broadcast %cst_60 : f32 to vector<2x32xf32>
    %181 = arith.addf %180, %179 : vector<2x32xf32>
    %182 = arith.divf %180, %181 : vector<2x32xf32>
    %183 = vector.extract_strided_slice %170 {offsets = [0, 64], sizes = [2, 32], strides = [1, 1]} : vector<2x128xf32> to vector<2x32xf32>
    %184 = math.tanh %183 : vector<2x32xf32>
    %185 = vector.extract_strided_slice %170 {offsets = [0, 96], sizes = [2, 32], strides = [1, 1]} : vector<2x128xf32> to vector<2x32xf32>
    %186 = arith.negf %185 : vector<2x32xf32>
    %187 = math.exp %186 : vector<2x32xf32>
    %cst_61 = arith.constant 1.000000e+00 : f32
    %188 = vector.broadcast %cst_61 : f32 to vector<2x32xf32>
    %189 = arith.addf %188, %187 : vector<2x32xf32>
    %190 = arith.divf %188, %189 : vector<2x32xf32>
    %191 = arith.mulf %182, %163 : vector<2x32xf32>
    %192 = arith.mulf %176, %184 : vector<2x32xf32>
    %193 = arith.addf %191, %192 : vector<2x32xf32>
    %194 = math.tanh %193 : vector<2x32xf32>
    %195 = arith.mulf %190, %194 : vector<2x32xf32>
    %c10_62 = arith.constant 10 : index
    %c0_63 = arith.constant 0 : index
    %196 = vector.load %arg12[%c10_62, %c0_63] : memref<16x32xf32, #tpu.memory_space<vmem>>, vector<2x32xf32>
    tpu.vector_store %arg12[%c10_62, %c0_63], %195 {strides = array<i32>} : memref<16x32xf32, #tpu.memory_space<vmem>>, vector<2x32xf32>,
    %c12 = arith.constant 12 : index
    %c0_64 = arith.constant 0 : index
    %197 = vector.load %arg11[%c12, %c0_64] : memref<16x128xf32, #tpu.memory_space<vmem>>, vector<2x128xf32>
    %198 = arith.addf %197, %7 : vector<2x128xf32>
    %cst_65 = arith.constant dense<0.000000e+00> : vector<2x128xf32>
    %199 = tpu.matmul %195, %14, %cst_65 {dimension_numbers = #tpu.dot_dimension_numbers<[1], [0], [0], [1], [0, 0, 1, 1], [], []>} : vector<2x32xf32>, vector<32x128xf32>, vector<2x128xf32> -> vector<2x128xf32>
    %200 = arith.addf %198, %199 : vector<2x128xf32>
    %201 = vector.extract_strided_slice %200 {offsets = [0, 0], sizes = [2, 32], strides = [1, 1]} : vector<2x128xf32> to vector<2x32xf32>
    %202 = arith.negf %201 : vector<2x32xf32>
    %203 = math.exp %202 : vector<2x32xf32>
    %cst_66 = arith.constant 1.000000e+00 : f32
    %204 = vector.broadcast %cst_66 : f32 to vector<2x32xf32>
    %205 = arith.addf %204, %203 : vector<2x32xf32>
    %206 = arith.divf %204, %205 : vector<2x32xf32>
    %207 = vector.extract_strided_slice %200 {offsets = [0, 32], sizes = [2, 32], strides = [1, 1]} : vector<2x128xf32> to vector<2x32xf32>
    %208 = arith.negf %207 : vector<2x32xf32>
    %209 = math.exp %208 : vector<2x32xf32>
    %cst_67 = arith.constant 1.000000e+00 : f32
    %210 = vector.broadcast %cst_67 : f32 to vector<2x32xf32>
    %211 = arith.addf %210, %209 : vector<2x32xf32>
    %212 = arith.divf %210, %211 : vector<2x32xf32>
    %213 = vector.extract_strided_slice %200 {offsets = [0, 64], sizes = [2, 32], strides = [1, 1]} : vector<2x128xf32> to vector<2x32xf32>
    %214 = math.tanh %213 : vector<2x32xf32>
    %215 = vector.extract_strided_slice %200 {offsets = [0, 96], sizes = [2, 32], strides = [1, 1]} : vector<2x128xf32> to vector<2x32xf32>
    %216 = arith.negf %215 : vector<2x32xf32>
    %217 = math.exp %216 : vector<2x32xf32>
    %cst_68 = arith.constant 1.000000e+00 : f32
    %218 = vector.broadcast %cst_68 : f32 to vector<2x32xf32>
    %219 = arith.addf %218, %217 : vector<2x32xf32>
    %220 = arith.divf %218, %219 : vector<2x32xf32>
    %221 = arith.mulf %212, %193 : vector<2x32xf32>
    %222 = arith.mulf %206, %214 : vector<2x32xf32>
    %223 = arith.addf %221, %222 : vector<2x32xf32>
    %224 = math.tanh %223 : vector<2x32xf32>
    %225 = arith.mulf %220, %224 : vector<2x32xf32>
    %c12_69 = arith.constant 12 : index
    %c0_70 = arith.constant 0 : index
    %226 = vector.load %arg12[%c12_69, %c0_70] : memref<16x32xf32, #tpu.memory_space<vmem>>, vector<2x32xf32>
    tpu.vector_store %arg12[%c12_69, %c0_70], %225 {strides = array<i32>} : memref<16x32xf32, #tpu.memory_space<vmem>>, vector<2x32xf32>,
    %c14 = arith.constant 14 : index
    %c0_71 = arith.constant 0 : index
    %227 = vector.load %arg11[%c14, %c0_71] : memref<16x128xf32, #tpu.memory_space<vmem>>, vector<2x128xf32>
    %228 = arith.addf %227, %7 : vector<2x128xf32>
    %cst_72 = arith.constant dense<0.000000e+00> : vector<2x128xf32>
    %229 = tpu.matmul %225, %14, %cst_72 {dimension_numbers = #tpu.dot_dimension_numbers<[1], [0], [0], [1], [0, 0, 1, 1], [], []>} : vector<2x32xf32>, vector<32x128xf32>, vector<2x128xf32> -> vector<2x128xf32>
    %230 = arith.addf %228, %229 : vector<2x128xf32>
    %231 = vector.extract_strided_slice %230 {offsets = [0, 0], sizes = [2, 32], strides = [1, 1]} : vector<2x128xf32> to vector<2x32xf32>
    %232 = arith.negf %231 : vector<2x32xf32>
    %233 = math.exp %232 : vector<2x32xf32>
    %cst_73 = arith.constant 1.000000e+00 : f32
    %234 = vector.broadcast %cst_73 : f32 to vector<2x32xf32>
    %235 = arith.addf %234, %233 : vector<2x32xf32>
    %236 = arith.divf %234, %235 : vector<2x32xf32>
    %237 = vector.extract_strided_slice %230 {offsets = [0, 32], sizes = [2, 32], strides = [1, 1]} : vector<2x128xf32> to vector<2x32xf32>
    %238 = arith.negf %237 : vector<2x32xf32>
    %239 = math.exp %238 : vector<2x32xf32>
    %cst_74 = arith.constant 1.000000e+00 : f32
    %240 = vector.broadcast %cst_74 : f32 to vector<2x32xf32>
    %241 = arith.addf %240, %239 : vector<2x32xf32>
    %242 = arith.divf %240, %241 : vector<2x32xf32>
    %243 = vector.extract_strided_slice %230 {offsets = [0, 64], sizes = [2, 32], strides = [1, 1]} : vector<2x128xf32> to vector<2x32xf32>
    %244 = math.tanh %243 : vector<2x32xf32>
    %245 = vector.extract_strided_slice %230 {offsets = [0, 96], sizes = [2, 32], strides = [1, 1]} : vector<2x128xf32> to vector<2x32xf32>
    %246 = arith.negf %245 : vector<2x32xf32>
    %247 = math.exp %246 : vector<2x32xf32>
    %cst_75 = arith.constant 1.000000e+00 : f32
    %248 = vector.broadcast %cst_75 : f32 to vector<2x32xf32>
    %249 = arith.addf %248, %247 : vector<2x32xf32>
    %250 = arith.divf %248, %249 : vector<2x32xf32>
    %251 = arith.mulf %242, %223 : vector<2x32xf32>
    %252 = arith.mulf %236, %244 : vector<2x32xf32>
    %253 = arith.addf %251, %252 : vector<2x32xf32>
    %254 = math.tanh %253 : vector<2x32xf32>
    %255 = arith.mulf %250, %254 : vector<2x32xf32>
    %c14_76 = arith.constant 14 : index
    %c0_77 = arith.constant 0 : index
    %256 = vector.load %arg12[%c14_76, %c0_77] : memref<16x32xf32, #tpu.memory_space<vmem>>, vector<2x32xf32>
    tpu.vector_store %arg12[%c14_76, %c0_77], %255 {strides = array<i32>} : memref<16x32xf32, #tpu.memory_space<vmem>>, vector<2x32xf32>,
    %c0_78 = arith.constant 0 : index
    %c0_79 = arith.constant 0 : index
    %257 = vector.load %arg12[%c0_78, %c0_79] : memref<16x32xf32, #tpu.memory_space<vmem>>, vector<16x32xf32>
    %c0_80 = arith.constant 0 : index
    %c0_81 = arith.constant 0 : index
    %258 = vector.load %arg8[%c0_80, %c0_81] : memref<32x128xf32, #tpu.memory_space<vmem>>, vector<32x128xf32>
    %cst_82 = arith.constant dense<0.000000e+00> : vector<16x128xf32>
    %259 = tpu.matmul %257, %258, %cst_82 {dimension_numbers = #tpu.dot_dimension_numbers<[1], [0], [0], [1], [0, 0, 1, 1], [], []>} : vector<16x32xf32>, vector<32x128xf32>, vector<16x128xf32> -> vector<16x128xf32>
    %c0_83 = arith.constant 0 : index
    %c0_84 = arith.constant 0 : index
    %260 = vector.load %arg9[%c0_83, %c0_84] : memref<1x128xf32, #tpu.memory_space<vmem>>, vector<1x128xf32>
    %261 = vector.broadcast %260 : vector<1x128xf32> to vector<16x128xf32>
    %262 = arith.addf %259, %261 : vector<16x128xf32>
    %c0_85 = arith.constant 0 : index
    %c0_86 = arith.constant 0 : index
    %263 = vector.load %arg10[%c0_85, %c0_86] : memref<16x128xf32, #tpu.memory_space<vmem>>, vector<16x128xf32>
    tpu.vector_store %arg10[%c0_85, %c0_86], %262 {strides = array<i32>} : memref<16x128xf32, #tpu.memory_space<vmem>>, vector<16x128xf32>,
    return
  }
}

</mosaic_0001>

<llo_original>
// kernel: baseline_decoder_forward.1
$region0: #{baseline_decoder_forward.1}
  #allocation0 [shape = 'u32[]', space=smem, size = 0x4, offset = 0x4, fixed_abs, tag = 'smem constant byte address 0x4 - core index']
  #allocation1 [shape = 'u32[144,128]{1,0:T(1,128)}', space=vmem, size = 0x12000, scoped, tag = 'internal scratch']
  #allocation2 [shape = 'f32[16,128]{1,0:T(8,128)}', space=vmem, size = 0x2000, scoped, tag = 'scratch operand']
  #allocation3 [shape = 'f32[16,32]{1,0:T(8,128)}', space=vmem, size = 0x2000, scoped, tag = 'scratch operand']
  %s0 = inlined_call_operand.vmem [shape: f32[16,32], index: 0, kind: input, shape index: {}]
  %s1 = inlined_call_operand.vmem [shape: f32[2,8], index: 1, kind: input, shape index: {}]
  %s2 = inlined_call_operand.vmem [shape: f32[8,16], index: 2, kind: input, shape index: {}]
  %s3 = inlined_call_operand.vmem [shape: f32[1,16], index: 3, kind: input, shape index: {}]
  %s4 = inlined_call_operand.vmem [shape: f32[32,128], index: 4, kind: input, shape index: {}]
  %s5 = inlined_call_operand.vmem [shape: f32[16,128], index: 5, kind: input, shape index: {}]
  %s6 = inlined_call_operand.vmem [shape: f32[16,128], index: 6, kind: input, shape index: {}]
  %s7 = inlined_call_operand.vmem [shape: f32[32,128], index: 7, kind: input, shape index: {}]
  %s8 = inlined_call_operand.vmem [shape: f32[32,128], index: 8, kind: input, shape index: {}]
  %s9 = inlined_call_operand.vmem [shape: f32[1,128], index: 9, kind: input, shape index: {}]
  %s10 = inlined_call_operand.vmem [shape: f32[16,128], index: 10, kind: output, shape index: {}]
  %s11 = sld [smem:[#allocation0]]
  $region50: #{baseline_decoder_forward.1} parent=0
    _
  %s13 = ssub.s32 1, %s11
  %s14 = scalar_select 0, %s13, %s11
  // Predicated region
  $region2: #{baseline_decoder_forward.1} parent=0 // pred_check
    _
  $region3: #{baseline_decoder_forward.1} parent=0 // pred_check_branch
    %16 = sbr.rel (0) target = $region5
  $region4: #{baseline_decoder_forward.1} parent=0 // pred_region
    _
  $region5: #{baseline_decoder_forward.1} parent=0 // pred_fallthru
    _
  // Predicated region
  $region6: #{baseline_decoder_forward.1} parent=0 // pred_check
    _
  $region7: #{baseline_decoder_forward.1} parent=0 // pred_check_branch
    %18 = sbr.rel (0) target = $region9
  $region8: #{baseline_decoder_forward.1} parent=0 // pred_region
    _
  $region9: #{baseline_decoder_forward.1} parent=0 // pred_fallthru
    _
  // Predicated region
  $region10: #{baseline_decoder_forward.1} parent=0 // pred_check
    _
  $region11: #{baseline_decoder_forward.1} parent=0 // pred_check_branch
    %20 = sbr.rel (0) target = $region13
  $region12: #{baseline_decoder_forward.1} parent=0 // pred_region
    _
  $region13: #{baseline_decoder_forward.1} parent=0 // pred_fallthru
    _
  // Predicated region
  $region14: #{baseline_decoder_forward.1} parent=0 // pred_check
    _
  $region15: #{baseline_decoder_forward.1} parent=0 // pred_check_branch
    %22 = sbr.rel (0) target = $region17
  $region16: #{baseline_decoder_forward.1} parent=0 // pred_region
    _
  $region17: #{baseline_decoder_forward.1} parent=0 // pred_fallthru
    _
  // Predicated region
  $region18: #{baseline_decoder_forward.1} parent=0 // pred_check
    _
  $region19: #{baseline_decoder_forward.1} parent=0 // pred_check_branch
    %24 = sbr.rel (0) target = $region21
  $region20: #{baseline_decoder_forward.1} parent=0 // pred_region
    _
  $region21: #{baseline_decoder_forward.1} parent=0 // pred_fallthru
    _
  // Predicated region
  $region22: #{baseline_decoder_forward.1} parent=0 // pred_check
    _
  $region23: #{baseline_decoder_forward.1} parent=0 // pred_check_branch
    %26 = sbr.rel (0) target = $region25
  $region24: #{baseline_decoder_forward.1} parent=0 // pred_region
    _
  $region25: #{baseline_decoder_forward.1} parent=0 // pred_fallthru
    _
  // Predicated region
  $region26: #{baseline_decoder_forward.1} parent=0 // pred_check
    _
  $region27: #{baseline_decoder_forward.1} parent=0 // pred_check_branch
    %28 = sbr.rel (0) target = $region29
  $region28: #{baseline_decoder_forward.1} parent=0 // pred_region
    _
  $region29: #{baseline_decoder_forward.1} parent=0 // pred_fallthru
    _
  // Predicated region
  $region30: #{baseline_decoder_forward.1} parent=0 // pred_check
    _
  $region31: #{baseline_decoder_forward.1} parent=0 // pred_check_branch
    %30 = sbr.rel (0) target = $region33
  $region32: #{baseline_decoder_forward.1} parent=0 // pred_region
    _
  $region33: #{baseline_decoder_forward.1} parent=0 // pred_fallthru
    _
  // Predicated region
  $region34: #{baseline_decoder_forward.1} parent=0 // pred_check
    _
  $region35: #{baseline_decoder_forward.1} parent=0 // pred_check_branch
    %32 = sbr.rel (0) target = $region37
  $region36: #{baseline_decoder_forward.1} parent=0 // pred_region
    _
  $region37: #{baseline_decoder_forward.1} parent=0 // pred_fallthru
    _
  // Predicated region
  $region38: #{baseline_decoder_forward.1} parent=0 // pred_check
    _
  $region39: #{baseline_decoder_forward.1} parent=0 // pred_check_branch
    %34 = sbr.rel (0) target = $region41
  $region40: #{baseline_decoder_forward.1} parent=0 // pred_region
    _
  $region41: #{baseline_decoder_forward.1} parent=0 // pred_fallthru
    _
  %v35 = vld [vmem:[%s1] sm:$0x3]
  %v36 = vld [vmem:[%s2] sm:$0xff]
  %v37 = vld [vmem:[%s3] sm:$0x1]
  %v39 = vlaneseq
  %v40 = vshrl.u32 %v39, 7
  %v41 = vsub.s32 0, %v40
  %v42 = vrot.slane %v37, %v41
  %vm44 = vcmask 64512
  %v46 = vsel %vm44, %v35, 0
  %48 = vmatprep.subr.mxu0 0.0
  %49 = vmatpush1.msra.mxu0 %v36
  %50 = vmatprep.subr.mxu0 0.0
  %51 = vmatpush1.msra.mxu0 0.0
  %52 = vmatprep.subr.mxu0 0.0
  %53 = vmatpush1.msra.mxu0 0.0
  %54 = vmatprep.subr.mxu0 0.0
  %55 = vmatpush1.msra.mxu0 0.0
  %56 = vmatprep.subr.mxu0 0.0
  %57 = vmatpush1.msra.mxu0 0.0
  %58 = vmatprep.subr.mxu0 0.0
  %59 = vmatpush1.msra.mxu0 0.0
  %60 = vmatprep.subr.mxu0 0.0
  %61 = vmatpush1.msra.mxu0 0.0
  %62 = vmatprep.subr.mxu0 0.0
  %63 = vmatpush1.msra.mxu0 0.0
  %64 = vmatprep.subr.mxu0 0.0
  %65 = vmatpush1.msra.mxu0 0.0
  %66 = vmatprep.subr.mxu0 0.0
  %67 = vmatpush1.msra.mxu0 0.0
  %68 = vmatprep.subr.mxu0 0.0
  %69 = vmatpush1.msra.mxu0 0.0
  %70 = vmatprep.subr.mxu0 0.0
  %71 = vmatpush1.msra.mxu0 0.0
  %72 = vmatprep.subr.mxu0 0.0
  %73 = vmatpush1.msra.mxu0 0.0
  %74 = vmatprep.subr.mxu0 0.0
  %75 = vmatpush1.msra.mxu0 0.0
  %76 = vmatprep.subr.mxu0 0.0
  %77 = vmatpush1.msra.mxu0 0.0
  %78 = vmatprep.subr.mxu0 0.0
  %79 = vmatpush1.msra.mxu0 0.0
  %80 = vmatprep.subr.mxu0 0.0
  %81 = vmatpush1.msra.mxu0 0.0
  %82 = vmatprep.subr.mxu0 0.0
  %83 = vmatpush1.msra.mxu0 0.0
  %84 = vmatprep.subr.mxu0 0.0
  %85 = vmatpush1.msra.mxu0 0.0
  %86 = vmatprep.subr.mxu0 0.0
  %87 = vmatpush1.msra.mxu0 0.0
  %88 = vmatprep.subr.mxu0 0.0
  %89 = vmatpush1.msra.mxu0 0.0
  %90 = vmatprep.subr.mxu0 0.0
  %91 = vmatpush1.msra.mxu0 0.0
  %92 = vmatprep.subr.mxu0 0.0
  %93 = vmatpush1.msra.mxu0 0.0
  %94 = vmatprep.subr.mxu0 0.0
  %95 = vmatpush1.msra.mxu0 0.0
  %96 = vmatprep.subr.mxu0 0.0
  %97 = vmatpush1.msra.mxu0 0.0
  %98 = vmatprep.subr.mxu0 0.0
  %99 = vmatpush1.msra.mxu0 0.0
  %100 = vmatprep.subr.mxu0 0.0
  %101 = vmatpush1.msra.mxu0 0.0
  %102 = vmatprep.subr.mxu0 0.0
  %103 = vmatpush1.msra.mxu0 0.0
  %104 = vmatprep.subr.mxu0 0.0
  %105 = vmatpush1.msra.mxu0 0.0
  %106 = vmatprep.subr.mxu0 0.0
  %107 = vmatpush1.msra.mxu0 0.0
  %108 = vmatprep.subr.mxu0 0.0
  %109 = vmatpush1.msra.mxu0 0.0
  %110 = vmatprep.subr.mxu0 0.0
  %111 = vmatpush1.msra.mxu0 0.0
  %112 = vmatprep.mubr.f32.mxu0 0.0
  %113 = vmatmul.mubr.f32.gmra.mrb[0].mxu0 %v46
  %v114 = vpop.f32.mrb[0].mxu0
  %v115 = vadd.f32 %v42, %v114
  %v116 = vpop.f32.mrb[0].mxu0
  %117 = vdwg.mxu0
  %v118 = vld [vmem:[%s5] sm:$0xff]
  %v119 = vld [vmem:[%s5 + $0x8] sm:$0xff]
  %vm120 = vcmask 130048
  %v122 = vsel %vm120, %v115, 0
  %124 = vmatprep.subr.mxu0 0.0
  %125 = vmatpush1.msra.mxu0 %v118
  %126 = vmatprep.subr.mxu0 0.0
  %127 = vmatpush1.msra.mxu0 %v119
  %128 = vmatprep.subr.mxu0 0.0
  %129 = vmatpush1.msra.mxu0 0.0
  %130 = vmatprep.subr.mxu0 0.0
  %131 = vmatpush1.msra.mxu0 0.0
  %132 = vmatprep.subr.mxu0 0.0
  %133 = vmatpush1.msra.mxu0 0.0
  %134 = vmatprep.subr.mxu0 0.0
  %135 = vmatpush1.msra.mxu0 0.0
  %136 = vmatprep.subr.mxu0 0.0
  %137 = vmatpush1.msra.mxu0 0.0
  %138 = vmatprep.subr.mxu0 0.0
  %139 = vmatpush1.msra.mxu0 0.0
  %140 = vmatprep.subr.mxu0 0.0
  %141 = vmatpush1.msra.mxu0 0.0
  %142 = vmatprep.subr.mxu0 0.0
  %143 = vmatpush1.msra.mxu0 0.0
  %144 = vmatprep.subr.mxu0 0.0
  %145 = vmatpush1.msra.mxu0 0.0
  %146 = vmatprep.subr.mxu0 0.0
  %147 = vmatpush1.msra.mxu0 0.0
  %148 = vmatprep.subr.mxu0 0.0
  %149 = vmatpush1.msra.mxu0 0.0
  %150 = vmatprep.subr.mxu0 0.0
  %151 = vmatpush1.msra.mxu0 0.0
  %152 = vmatprep.subr.mxu0 0.0
  %153 = vmatpush1.msra.mxu0 0.0
  %154 = vmatprep.subr.mxu0 0.0
  %155 = vmatpush1.msra.mxu0 0.0
  %156 = vmatprep.subr.mxu0 0.0
  %157 = vmatpush1.msra.mxu0 0.0
  %158 = vmatprep.subr.mxu0 0.0
  %159 = vmatpush1.msra.mxu0 0.0
  %160 = vmatprep.subr.mxu0 0.0
  %161 = vmatpush1.msra.mxu0 0.0
  %162 = vmatprep.subr.mxu0 0.0
  %163 = vmatpush1.msra.mxu0 0.0
  %164 = vmatprep.subr.mxu0 0.0
  %165 = vmatpush1.msra.mxu0 0.0
  %166 = vmatprep.subr.mxu0 0.0
  %167 = vmatpush1.msra.mxu0 0.0
  %168 = vmatprep.subr.mxu0 0.0
  %169 = vmatpush1.msra.mxu0 0.0
  %170 = vmatprep.subr.mxu0 0.0
  %171 = vmatpush1.msra.mxu0 0.0
  %172 = vmatprep.subr.mxu0 0.0
  %173 = vmatpush1.msra.mxu0 0.0
  %174 = vmatprep.subr.mxu0 0.0
  %175 = vmatpush1.msra.mxu0 0.0
  %176 = vmatprep.subr.mxu0 0.0
  %177 = vmatpush1.msra.mxu0 0.0
  %178 = vmatprep.subr.mxu0 0.0
  %179 = vmatpush1.msra.mxu0 0.0
  %180 = vmatprep.subr.mxu0 0.0
  %181 = vmatpush1.msra.mxu0 0.0
  %182 = vmatprep.subr.mxu0 0.0
  %183 = vmatpush1.msra.mxu0 0.0
  %184 = vmatprep.subr.mxu0 0.0
  %185 = vmatpush1.msra.mxu0 0.0
  %186 = vmatprep.subr.mxu0 0.0
  %187 = vmatpush1.msra.mxu0 0.0
  %188 = vmatprep.mubr.f32.mxu0 0.0
  %189 = vmatmul.mubr.f32.gmra.mrb[0].mxu0 %v122
  %v190 = vpop.f32.mrb[0].mxu0
  %v191 = vadd.f32 0.0, %v190
  %v192 = vpop.f32.mrb[0].mxu0
  %193 = vdwg.mxu0
  %v194 = vld [vmem:[%s0] sm:$0xff]
  %v195 = vld [vmem:[%s0 + $0x8] sm:$0xff]
  %v196 = vld [vmem:[%s4] sm:$0xff]
  %v197 = vld [vmem:[%s4 + $0x8] sm:$0xff]
  %v198 = vld [vmem:[%s4 + $0x10] sm:$0xff]
  %v199 = vld [vmem:[%s4 + $0x18] sm:$0xff]
  %v200 = vld [vmem:[%s6] sm:$0xff]
  %v201 = vld [vmem:[%s6 + $0x8] sm:$0xff]
  %vm202 = vcmask 261120
  %v204 = vsel %vm202, %v194, 0
  %v207 = vsel %vm202, %v195, 0
  %209 = vmatprep.subr.mxu0 0.0
  %210 = vmatpush1.msra.mxu0 %v196
  %211 = vmatprep.subr.mxu0 0.0
  %212 = vmatpush1.msra.mxu0 %v197
  %213 = vmatprep.subr.mxu0 0.0
  %214 = vmatpush1.msra.mxu0 %v198
  %215 = vmatprep.subr.mxu0 0.0
  %216 = vmatpush1.msra.mxu0 %v199
  %217 = vmatprep.subr.mxu0 0.0
  %218 = vmatpush1.msra.mxu0 0.0
  %219 = vmatprep.subr.mxu0 0.0
  %220 = vmatpush1.msra.mxu0 0.0
  %221 = vmatprep.subr.mxu0 0.0
  %222 = vmatpush1.msra.mxu0 0.0
  %223 = vmatprep.subr.mxu0 0.0
  %224 = vmatpush1.msra.mxu0 0.0
  %225 = vmatprep.subr.mxu0 0.0
  %226 = vmatpush1.msra.mxu0 0.0
  %227 = vmatprep.subr.mxu0 0.0
  %228 = vmatpush1.msra.mxu0 0.0
  %229 = vmatprep.subr.mxu0 0.0
  %230 = vmatpush1.msra.mxu0 0.0
  %231 = vmatprep.subr.mxu0 0.0
  %232 = vmatpush1.msra.mxu0 0.0
  %233 = vmatprep.subr.mxu0 0.0
  %234 = vmatpush1.msra.mxu0 0.0
  %235 = vmatprep.subr.mxu0 0.0
  %236 = vmatpush1.msra.mxu0 0.0
  %237 = vmatprep.subr.mxu0 0.0
  %238 = vmatpush1.msra.mxu0 0.0
  %239 = vmatprep.subr.mxu0 0.0
  %240 = vmatpush1.msra.mxu0 0.0
  %241 = vmatprep.subr.mxu0 0.0
  %242 = vmatpush1.msra.mxu0 0.0
  %243 = vmatprep.subr.mxu0 0.0
  %244 = vmatpush1.msra.mxu0 0.0
  %245 = vmatprep.subr.mxu0 0.0
  %246 = vmatpush1.msra.mxu0 0.0
  %247 = vmatprep.subr.mxu0 0.0
  %248 = vmatpush1.msra.mxu0 0.0
  %249 = vmatprep.subr.mxu0 0.0
  %250 = vmatpush1.msra.mxu0 0.0
  %251 = vmatprep.subr.mxu0 0.0
  %252 = vmatpush1.msra.mxu0 0.0
  %253 = vmatprep.subr.mxu0 0.0
  %254 = vmatpush1.msra.mxu0 0.0
  %255 = vmatprep.subr.mxu0 0.0
  %256 = vmatpush1.msra.mxu0 0.0
  %257 = vmatprep.subr.mxu0 0.0
  %258 = vmatpush1.msra.mxu0 0.0
  %259 = vmatprep.subr.mxu0 0.0
  %260 = vmatpush1.msra.mxu0 0.0
  %261 = vmatprep.subr.mxu0 0.0
  %262 = vmatpush1.msra.mxu0 0.0
  %263 = vmatprep.subr.mxu0 0.0
  %264 = vmatpush1.msra.mxu0 0.0
  %265 = vmatprep.subr.mxu0 0.0
  %266 = vmatpush1.msra.mxu0 0.0
  %267 = vmatprep.subr.mxu0 0.0
  %268 = vmatpush1.msra.mxu0 0.0
  %269 = vmatprep.subr.mxu0 0.0
  %270 = vmatpush1.msra.mxu0 0.0
  %271 = vmatprep.subr.mxu0 0.0
  %272 = vmatpush1.msra.mxu0 0.0
  %273 = vmatprep.mubr.f32.mxu0 0.0
  %274 = vmatmul.mubr.f32.gmra.mrb[0].mxu0 %v204
  %v275 = vpop.f32.mrb[0].mxu0
  %v276 = vadd.f32 %v200, %v275
  %v277 = vpop.f32.mrb[0].mxu0
  %278 = vmatprep.mubr.f32.mxu0 0.0
  %279 = vmatmul.mubr.f32.gmra.mrb[0].mxu0 %v207
  %v280 = vpop.f32.mrb[0].mxu0
  %v281 = vadd.f32 %v201, %v280
  %v282 = vpop.f32.mrb[0].mxu0
  %283 = vdwg.mxu0
  %284 = vst [vmem:[#allocation2] sm:$0xff] %v276
  %285 = vst [vmem:[#allocation2 + $0x8] sm:$0xff] %v281
  %v286 = vld [vmem:[%s7] sm:$0xff]
  %v287 = vld [vmem:[%s7 + $0x8] sm:$0xff]
  %v288 = vld [vmem:[%s7 + $0x10] sm:$0xff]
  %v289 = vld [vmem:[%s7 + $0x18] sm:$0xff]
  %v290 = vld [vmem:[#allocation2] sm:$0x3]
  %v291 = vadd.f32 %v290, %v191
  %v293 = vsel %vm202, 0.0, 0
  %295 = vmatprep.subr.mxu0 0.0
  %296 = vmatpush1.msra.mxu0 %v286
  %297 = vmatprep.subr.mxu0 0.0
  %298 = vmatpush1.msra.mxu0 %v287
  %299 = vmatprep.subr.mxu0 0.0
  %300 = vmatpush1.msra.mxu0 %v288
  %301 = vmatprep.subr.mxu0 0.0
  %302 = vmatpush1.msra.mxu0 %v289
  %303 = vmatprep.subr.mxu0 0.0
  %304 = vmatpush1.msra.mxu0 0.0
  %305 = vmatprep.subr.mxu0 0.0
  %306 = vmatpush1.msra.mxu0 0.0
  %307 = vmatprep.subr.mxu0 0.0
  %308 = vmatpush1.msra.mxu0 0.0
  %309 = vmatprep.subr.mxu0 0.0
  %310 = vmatpush1.msra.mxu0 0.0
  %311 = vmatprep.subr.mxu0 0.0
  %312 = vmatpush1.msra.mxu0 0.0
  %313 = vmatprep.subr.mxu0 0.0
  %314 = vmatpush1.msra.mxu0 0.0
  %315 = vmatprep.subr.mxu0 0.0
  %316 = vmatpush1.msra.mxu0 0.0
  %317 = vmatprep.subr.mxu0 0.0
  %318 = vmatpush1.msra.mxu0 0.0
  %319 = vmatprep.subr.mxu0 0.0
  %320 = vmatpush1.msra.mxu0 0.0
  %321 = vmatprep.subr.mxu0 0.0
  %322 = vmatpush1.msra.mxu0 0.0
  %323 = vmatprep.subr.mxu0 0.0
  %324 = vmatpush1.msra.mxu0 0.0
  %325 = vmatprep.subr.mxu0 0.0
  %326 = vmatpush1.msra.mxu0 0.0
  %327 = vmatprep.subr.mxu0 0.0
  %328 = vmatpush1.msra.mxu0 0.0
  %329 = vmatprep.subr.mxu0 0.0
  %330 = vmatpush1.msra.mxu0 0.0
  %331 = vmatprep.subr.mxu0 0.0
  %332 = vmatpush1.msra.mxu0 0.0
  %333 = vmatprep.subr.mxu0 0.0
  %334 = vmatpush1.msra.mxu0 0.0
  %335 = vmatprep.subr.mxu0 0.0
  %336 = vmatpush1.msra.mxu0 0.0
  %337 = vmatprep.subr.mxu0 0.0
  %338 = vmatpush1.msra.mxu0 0.0
  %339 = vmatprep.subr.mxu0 0.0
  %340 = vmatpush1.msra.mxu0 0.0
  %341 = vmatprep.subr.mxu0 0.0
  %342 = vmatpush1.msra.mxu0 0.0
  %343 = vmatprep.subr.mxu0 0.0
  %344 = vmatpush1.msra.mxu0 0.0
  %345 = vmatprep.subr.mxu0 0.0
  %346 = vmatpush1.msra.mxu0 0.0
  %347 = vmatprep.subr.mxu0 0.0
  %348 = vmatpush1.msra.mxu0 0.0
  %349 = vmatprep.subr.mxu0 0.0
  %350 = vmatpush1.msra.mxu0 0.0
  %351 = vmatprep.subr.mxu0 0.0
  %352 = vmatpush1.msra.mxu0 0.0
  %353 = vmatprep.subr.mxu0 0.0
  %354 = vmatpush1.msra.mxu0 0.0
  %355 = vmatprep.subr.mxu0 0.0
  %356 = vmatpush1.msra.mxu0 0.0
  %357 = vmatprep.subr.mxu0 0.0
  %358 = vmatpush1.msra.mxu0 0.0
  %359 = vmatprep.mubr.f32.mxu0 0.0
  %360 = vmatmul.mubr.f32.gmra.mrb[0].mxu0 %v293
  %v361 = vpop.f32.mrb[0].mxu0
  %v362 = vadd.f32 0.0, %v361
  %v363 = vpop.f32.mrb[0].mxu0
  %364 = vdwg.mxu0
  %v365 = vadd.f32 %v291, %v362
  %v366 = vxor.u32 %v365, 2147483648
  %v367 = vmul.f32 %v366, 1.442695
  %v368 = vpow.pop %v367
  %v369 = vadd.f32 %v368, 1.0
  %v370 = vrcp.pop %v369
  %v371 = vmul.f32 1.0, %v370
  %v372 = vtanh.pop %v365
  %v373 = vmul.f32 %v371, 0.0
  %375 = vrot.lane.b32.xlu0 %v372, 64
  %v376 = vpop.permute.xlu0 %375
  %v378 = vmul.f32 %v371, %v376
  %380 = vrot.lane.b32.xlu0 %v378, 32
  %v381 = vpop.permute.xlu0 %380
  %v383 = vadd.f32 %v373, %v381
  %v384 = vtanh.pop %v383
  %386 = vrot.lane.b32.xlu0 %v384, 64
  %v387 = vpop.permute.xlu0 %386
  %v389 = vmul.f32 %v371, %v387
  %391 = vrot.lane.b32.xlu0 %v389, 32
  %v392 = vpop.permute.xlu0 %391
  %vm394 = vcmask 254976
  %395 = vst.msk [vmem:[#allocation3] sm:$0x3] %vm394, %v392
  %v396 = vld [vmem:[#allocation2 + $0x2] sm:$0x3]
  %v397 = vadd.f32 %v396, %v191
  %v398 = vsel %vm202, %v392, 0
  %400 = vmatprep.subr.mxu0 0.0
  %401 = vmatpush1.msra.mxu0 %v286
  %402 = vmatprep.subr.mxu0 0.0
  %403 = vmatpush1.msra.mxu0 %v287
  %404 = vmatprep.subr.mxu0 0.0
  %405 = vmatpush1.msra.mxu0 %v288
  %406 = vmatprep.subr.mxu0 0.0
  %407 = vmatpush1.msra.mxu0 %v289
  %408 = vmatprep.subr.mxu0 0.0
  %409 = vmatpush1.msra.mxu0 0.0
  %410 = vmatprep.subr.mxu0 0.0
  %411 = vmatpush1.msra.mxu0 0.0
  %412 = vmatprep.subr.mxu0 0.0
  %413 = vmatpush1.msra.mxu0 0.0
  %414 = vmatprep.subr.mxu0 0.0
  %415 = vmatpush1.msra.mxu0 0.0
  %416 = vmatprep.subr.mxu0 0.0
  %417 = vmatpush1.msra.mxu0 0.0
  %418 = vmatprep.subr.mxu0 0.0
  %419 = vmatpush1.msra.mxu0 0.0
  %420 = vmatprep.subr.mxu0 0.0
  %421 = vmatpush1.msra.mxu0 0.0
  %422 = vmatprep.subr.mxu0 0.0
  %423 = vmatpush1.msra.mxu0 0.0
  %424 = vmatprep.subr.mxu0 0.0
  %425 = vmatpush1.msra.mxu0 0.0
  %426 = vmatprep.subr.mxu0 0.0
  %427 = vmatpush1.msra.mxu0 0.0
  %428 = vmatprep.subr.mxu0 0.0
  %429 = vmatpush1.msra.mxu0 0.0
  %430 = vmatprep.subr.mxu0 0.0
  %431 = vmatpush1.msra.mxu0 0.0
  %432 = vmatprep.subr.mxu0 0.0
  %433 = vmatpush1.msra.mxu0 0.0
  %434 = vmatprep.subr.mxu0 0.0
  %435 = vmatpush1.msra.mxu0 0.0
  %436 = vmatprep.subr.mxu0 0.0
  %437 = vmatpush1.msra.mxu0 0.0
  %438 = vmatprep.subr.mxu0 0.0
  %439 = vmatpush1.msra.mxu0 0.0
  %440 = vmatprep.subr.mxu0 0.0
  %441 = vmatpush1.msra.mxu0 0.0
  %442 = vmatprep.subr.mxu0 0.0
  %443 = vmatpush1.msra.mxu0 0.0
  %444 = vmatprep.subr.mxu0 0.0
  %445 = vmatpush1.msra.mxu0 0.0
  %446 = vmatprep.subr.mxu0 0.0
  %447 = vmatpush1.msra.mxu0 0.0
  %448 = vmatprep.subr.mxu0 0.0
  %449 = vmatpush1.msra.mxu0 0.0
  %450 = vmatprep.subr.mxu0 0.0
  %451 = vmatpush1.msra.mxu0 0.0
  %452 = vmatprep.subr.mxu0 0.0
  %453 = vmatpush1.msra.mxu0 0.0
  %454 = vmatprep.subr.mxu0 0.0
  %455 = vmatpush1.msra.mxu0 0.0
  %456 = vmatprep.subr.mxu0 0.0
  %457 = vmatpush1.msra.mxu0 0.0
  %458 = vmatprep.subr.mxu0 0.0
  %459 = vmatpush1.msra.mxu0 0.0
  %460 = vmatprep.subr.mxu0 0.0
  %461 = vmatpush1.msra.mxu0 0.0
  %462 = vmatprep.subr.mxu0 0.0
  %463 = vmatpush1.msra.mxu0 0.0
  %464 = vmatprep.mubr.f32.mxu0 0.0
  %465 = vmatmul.mubr.f32.gmra.mrb[0].mxu0 %v398
  %v466 = vpop.f32.mrb[0].mxu0
  %v467 = vadd.f32 0.0, %v466
  %v468 = vpop.f32.mrb[0].mxu0
  %469 = vdwg.mxu0
  %v470 = vadd.f32 %v397, %v467
  %v471 = vxor.u32 %v470, 2147483648
  %v472 = vmul.f32 %v471, 1.442695
  %v473 = vpow.pop %v472
  %v474 = vadd.f32 %v473, 1.0
  %v475 = vrcp.pop %v474
  %v476 = vmul.f32 1.0, %v475
  %v477 = vtanh.pop %v470
  %v478 = vmul.f32 %v476, %v383
  %480 = vrot.lane.b32.xlu0 %v477, 64
  %v481 = vpop.permute.xlu0 %480
  %v483 = vmul.f32 %v476, %v481
  %485 = vrot.lane.b32.xlu0 %v483, 32
  %v486 = vpop.permute.xlu0 %485
  %v488 = vadd.f32 %v478, %v486
  %v489 = vtanh.pop %v488
  %491 = vrot.lane.b32.xlu0 %v489, 64
  %v492 = vpop.permute.xlu0 %491
  %v494 = vmul.f32 %v476, %v492
  %496 = vrot.lane.b32.xlu0 %v494, 32
  %v497 = vpop.permute.xlu0 %496
  %499 = vst.msk [vmem:[#allocation3 + $0x2] sm:$0x3] %vm394, %v497
  %v500 = vld [vmem:[#allocation2 + $0x4] sm:$0x3]
  %v501 = vadd.f32 %v500, %v191
  %v502 = vsel %vm202, %v497, 0
  %504 = vmatprep.subr.mxu0 0.0
  %505 = vmatpush1.msra.mxu0 %v286
  %506 = vmatprep.subr.mxu0 0.0
  %507 = vmatpush1.msra.mxu0 %v287
  %508 = vmatprep.subr.mxu0 0.0
  %509 = vmatpush1.msra.mxu0 %v288
  %510 = vmatprep.subr.mxu0 0.0
  %511 = vmatpush1.msra.mxu0 %v289
  %512 = vmatprep.subr.mxu0 0.0
  %513 = vmatpush1.msra.mxu0 0.0
  %514 = vmatprep.subr.mxu0 0.0
  %515 = vmatpush1.msra.mxu0 0.0
  %516 = vmatprep.subr.mxu0 0.0
  %517 = vmatpush1.msra.mxu0 0.0
  %518 = vmatprep.subr.mxu0 0.0
  %519 = vmatpush1.msra.mxu0 0.0
  %520 = vmatprep.subr.mxu0 0.0
  %521 = vmatpush1.msra.mxu0 0.0
  %522 = vmatprep.subr.mxu0 0.0
  %523 = vmatpush1.msra.mxu0 0.0
  %524 = vmatprep.subr.mxu0 0.0
  %525 = vmatpush1.msra.mxu0 0.0
  %526 = vmatprep.subr.mxu0 0.0
  %527 = vmatpush1.msra.mxu0 0.0
  %528 = vmatprep.subr.mxu0 0.0
  %529 = vmatpush1.msra.mxu0 0.0
  %530 = vmatprep.subr.mxu0 0.0
  %531 = vmatpush1.msra.mxu0 0.0
  %532 = vmatprep.subr.mxu0 0.0
  %533 = vmatpush1.msra.mxu0 0.0
  %534 = vmatprep.subr.mxu0 0.0
  %535 = vmatpush1.msra.mxu0 0.0
  %536 = vmatprep.subr.mxu0 0.0
  %537 = vmatpush1.msra.mxu0 0.0
  %538 = vmatprep.subr.mxu0 0.0
  %539 = vmatpush1.msra.mxu0 0.0
  %540 = vmatprep.subr.mxu0 0.0
  %541 = vmatpush1.msra.mxu0 0.0
  %542 = vmatprep.subr.mxu0 0.0
  %543 = vmatpush1.msra.mxu0 0.0
  %544 = vmatprep.subr.mxu0 0.0
  %545 = vmatpush1.msra.mxu0 0.0
  %546 = vmatprep.subr.mxu0 0.0
  %547 = vmatpush1.msra.mxu0 0.0
  %548 = vmatprep.subr.mxu0 0.0
  %549 = vmatpush1.msra.mxu0 0.0
  %550 = vmatprep.subr.mxu0 0.0
  %551 = vmatpush1.msra.mxu0 0.0
  %552 = vmatprep.subr.mxu0 0.0
  %553 = vmatpush1.msra.mxu0 0.0
  %554 = vmatprep.subr.mxu0 0.0
  %555 = vmatpush1.msra.mxu0 0.0
  %556 = vmatprep.subr.mxu0 0.0
  %557 = vmatpush1.msra.mxu0 0.0
  %558 = vmatprep.subr.mxu0 0.0
  %559 = vmatpush1.msra.mxu0 0.0
  %560 = vmatprep.subr.mxu0 0.0
  %561 = vmatpush1.msra.mxu0 0.0
  %562 = vmatprep.subr.mxu0 0.0
  %563 = vmatpush1.msra.mxu0 0.0
  %564 = vmatprep.subr.mxu0 0.0
  %565 = vmatpush1.msra.mxu0 0.0
  %566 = vmatprep.subr.mxu0 0.0
  %567 = vmatpush1.msra.mxu0 0.0
  %568 = vmatprep.mubr.f32.mxu0 0.0
  %569 = vmatmul.mubr.f32.gmra.mrb[0].mxu0 %v502
  %v570 = vpop.f32.mrb[0].mxu0
  %v571 = vadd.f32 0.0, %v570
  %v572 = vpop.f32.mrb[0].mxu0
  %573 = vdwg.mxu0
  %v574 = vadd.f32 %v501, %v571
  %v575 = vxor.u32 %v574, 2147483648
  %v576 = vmul.f32 %v575, 1.442695
  %v577 = vpow.pop %v576
  %v578 = vadd.f32 %v577, 1.0
  %v579 = vrcp.pop %v578
  %v580 = vmul.f32 1.0, %v579
  %v581 = vtanh.pop %v574
  %v582 = vmul.f32 %v580, %v488
  %584 = vrot.lane.b32.xlu0 %v581, 64
  %v585 = vpop.permute.xlu0 %584
  %v587 = vmul.f32 %v580, %v585
  %589 = vrot.lane.b32.xlu0 %v587, 32
  %v590 = vpop.permute.xlu0 %589
  %v592 = vadd.f32 %v582, %v590
  %v593 = vtanh.pop %v592
  %595 = vrot.lane.b32.xlu0 %v593, 64
  %v596 = vpop.permute.xlu0 %595
  %v598 = vmul.f32 %v580, %v596
  %600 = vrot.lane.b32.xlu0 %v598, 32
  %v601 = vpop.permute.xlu0 %600
  %603 = vst.msk [vmem:[#allocation3 + $0x4] sm:$0x3] %vm394, %v601
  %v604 = vld [vmem:[#allocation2 + $0x6] sm:$0x3]
  %v605 = vadd.f32 %v604, %v191
  %v606 = vsel %vm202, %v601, 0
  %608 = vmatprep.subr.mxu0 0.0
  %609 = vmatpush1.msra.mxu0 %v286
  %610 = vmatprep.subr.mxu0 0.0
  %611 = vmatpush1.msra.mxu0 %v287
  %612 = vmatprep.subr.mxu0 0.0
  %613 = vmatpush1.msra.mxu0 %v288
  %614 = vmatprep.subr.mxu0 0.0
  %615 = vmatpush1.msra.mxu0 %v289
  %616 = vmatprep.subr.mxu0 0.0
  %617 = vmatpush1.msra.mxu0 0.0
  %618 = vmatprep.subr.mxu0 0.0
  %619 = vmatpush1.msra.mxu0 0.0
  %620 = vmatprep.subr.mxu0 0.0
  %621 = vmatpush1.msra.mxu0 0.0
  %622 = vmatprep.subr.mxu0 0.0
  %623 = vmatpush1.msra.mxu0 0.0
  %624 = vmatprep.subr.mxu0 0.0
  %625 = vmatpush1.msra.mxu0 0.0
  %626 = vmatprep.subr.mxu0 0.0
  %627 = vmatpush1.msra.mxu0 0.0
  %628 = vmatprep.subr.mxu0 0.0
  %629 = vmatpush1.msra.mxu0 0.0
  %630 = vmatprep.subr.mxu0 0.0
  %631 = vmatpush1.msra.mxu0 0.0
  %632 = vmatprep.subr.mxu0 0.0
  %633 = vmatpush1.msra.mxu0 0.0
  %634 = vmatprep.subr.mxu0 0.0
  %635 = vmatpush1.msra.mxu0 0.0
  %636 = vmatprep.subr.mxu0 0.0
  %637 = vmatpush1.msra.mxu0 0.0
  %638 = vmatprep.subr.mxu0 0.0
  %639 = vmatpush1.msra.mxu0 0.0
  %640 = vmatprep.subr.mxu0 0.0
  %641 = vmatpush1.msra.mxu0 0.0
  %642 = vmatprep.subr.mxu0 0.0
  %643 = vmatpush1.msra.mxu0 0.0
  %644 = vmatprep.subr.mxu0 0.0
  %645 = vmatpush1.msra.mxu0 0.0
  %646 = vmatprep.subr.mxu0 0.0
  %647 = vmatpush1.msra.mxu0 0.0
  %648 = vmatprep.subr.mxu0 0.0
  %649 = vmatpush1.msra.mxu0 0.0
  %650 = vmatprep.subr.mxu0 0.0
  %651 = vmatpush1.msra.mxu0 0.0
  %652 = vmatprep.subr.mxu0 0.0
  %653 = vmatpush1.msra.mxu0 0.0
  %654 = vmatprep.subr.mxu0 0.0
  %655 = vmatpush1.msra.mxu0 0.0
  %656 = vmatprep.subr.mxu0 0.0
  %657 = vmatpush1.msra.mxu0 0.0
  %658 = vmatprep.subr.mxu0 0.0
  %659 = vmatpush1.msra.mxu0 0.0
  %660 = vmatprep.subr.mxu0 0.0
  %661 = vmatpush1.msra.mxu0 0.0
  %662 = vmatprep.subr.mxu0 0.0
  %663 = vmatpush1.msra.mxu0 0.0
  %664 = vmatprep.subr.mxu0 0.0
  %665 = vmatpush1.msra.mxu0 0.0
  %666 = vmatprep.subr.mxu0 0.0
  %667 = vmatpush1.msra.mxu0 0.0
  %668 = vmatprep.subr.mxu0 0.0
  %669 = vmatpush1.msra.mxu0 0.0
  %670 = vmatprep.subr.mxu0 0.0
  %671 = vmatpush1.msra.mxu0 0.0
  %672 = vmatprep.mubr.f32.mxu0 0.0
  %673 = vmatmul.mubr.f32.gmra.mrb[0].mxu0 %v606
  %v674 = vpop.f32.mrb[0].mxu0
  %v675 = vadd.f32 0.0, %v674
  %v676 = vpop.f32.mrb[0].mxu0
  %677 = vdwg.mxu0
  %v678 = vadd.f32 %v605, %v675
  %v679 = vxor.u32 %v678, 2147483648
  %v680 = vmul.f32 %v679, 1.442695
  %v681 = vpow.pop %v680
  %v682 = vadd.f32 %v681, 1.0
  %v683 = vrcp.pop %v682
  %v684 = vmul.f32 1.0, %v683
  %v685 = vtanh.pop %v678
  %v686 = vmul.f32 %v684, %v592
  %688 = vrot.lane.b32.xlu0 %v685, 64
  %v689 = vpop.permute.xlu0 %688
  %v691 = vmul.f32 %v684, %v689
  %693 = vrot.lane.b32.xlu0 %v691, 32
  %v694 = vpop.permute.xlu0 %693
  %v696 = vadd.f32 %v686, %v694
  %v697 = vtanh.pop %v696
  %699 = vrot.lane.b32.xlu0 %v697, 64
  %v700 = vpop.permute.xlu0 %699
  %v702 = vmul.f32 %v684, %v700
  %704 = vrot.lane.b32.xlu0 %v702, 32
  %v705 = vpop.permute.xlu0 %704
  %707 = vst.msk [vmem:[#allocation3 + $0x6] sm:$0x3] %vm394, %v705
  %v708 = vld [vmem:[#allocation2 + $0x8] sm:$0x3]
  %v709 = vadd.f32 %v708, %v191
  %v710 = vsel %vm202, %v705, 0
  %712 = vmatprep.subr.mxu0 0.0
  %713 = vmatpush1.msra.mxu0 %v286
  %714 = vmatprep.subr.mxu0 0.0
  %715 = vmatpush1.msra.mxu0 %v287
  %716 = vmatprep.subr.mxu0 0.0
  %717 = vmatpush1.msra.mxu0 %v288
  %718 = vmatprep.subr.mxu0 0.0
  %719 = vmatpush1.msra.mxu0 %v289
  %720 = vmatprep.subr.mxu0 0.0
  %721 = vmatpush1.msra.mxu0 0.0
  %722 = vmatprep.subr.mxu0 0.0
  %723 = vmatpush1.msra.mxu0 0.0
  %724 = vmatprep.subr.mxu0 0.0
  %725 = vmatpush1.msra.mxu0 0.0
  %726 = vmatprep.subr.mxu0 0.0
  %727 = vmatpush1.msra.mxu0 0.0
  %728 = vmatprep.subr.mxu0 0.0
  %729 = vmatpush1.msra.mxu0 0.0
  %730 = vmatprep.subr.mxu0 0.0
  %731 = vmatpush1.msra.mxu0 0.0
  %732 = vmatprep.subr.mxu0 0.0
  %733 = vmatpush1.msra.mxu0 0.0
  %734 = vmatprep.subr.mxu0 0.0
  %735 = vmatpush1.msra.mxu0 0.0
  %736 = vmatprep.subr.mxu0 0.0
  %737 = vmatpush1.msra.mxu0 0.0
  %738 = vmatprep.subr.mxu0 0.0
  %739 = vmatpush1.msra.mxu0 0.0
  %740 = vmatprep.subr.mxu0 0.0
  %741 = vmatpush1.msra.mxu0 0.0
  %742 = vmatprep.subr.mxu0 0.0
  %743 = vmatpush1.msra.mxu0 0.0
  %744 = vmatprep.subr.mxu0 0.0
  %745 = vmatpush1.msra.mxu0 0.0
  %746 = vmatprep.subr.mxu0 0.0
  %747 = vmatpush1.msra.mxu0 0.0
  %748 = vmatprep.subr.mxu0 0.0
  %749 = vmatpush1.msra.mxu0 0.0
  %750 = vmatprep.subr.mxu0 0.0
  %751 = vmatpush1.msra.mxu0 0.0
  %752 = vmatprep.subr.mxu0 0.0
  %753 = vmatpush1.msra.mxu0 0.0
  %754 = vmatprep.subr.mxu0 0.0
  %755 = vmatpush1.msra.mxu0 0.0
  %756 = vmatprep.subr.mxu0 0.0
  %757 = vmatpush1.msra.mxu0 0.0
  %758 = vmatprep.subr.mxu0 0.0
  %759 = vmatpush1.msra.mxu0 0.0
  %760 = vmatprep.subr.mxu0 0.0
  %761 = vmatpush1.msra.mxu0 0.0
  %762 = vmatprep.subr.mxu0 0.0
  %763 = vmatpush1.msra.mxu0 0.0
  %764 = vmatprep.subr.mxu0 0.0
  %765 = vmatpush1.msra.mxu0 0.0
  %766 = vmatprep.subr.mxu0 0.0
  %767 = vmatpush1.msra.mxu0 0.0
  %768 = vmatprep.subr.mxu0 0.0
  %769 = vmatpush1.msra.mxu0 0.0
  %770 = vmatprep.subr.mxu0 0.0
  %771 = vmatpush1.msra.mxu0 0.0
  %772 = vmatprep.subr.mxu0 0.0
  %773 = vmatpush1.msra.mxu0 0.0
  %774 = vmatprep.subr.mxu0 0.0
  %775 = vmatpush1.msra.mxu0 0.0
  %776 = vmatprep.mubr.f32.mxu0 0.0
  %777 = vmatmul.mubr.f32.gmra.mrb[0].mxu0 %v710
  %v778 = vpop.f32.mrb[0].mxu0
  %v779 = vadd.f32 0.0, %v778
  %v780 = vpop.f32.mrb[0].mxu0
  %781 = vdwg.mxu0
  %v782 = vadd.f32 %v709, %v779
  %v783 = vxor.u32 %v782, 2147483648
  %v784 = vmul.f32 %v783, 1.442695
  %v785 = vpow.pop %v784
  %v786 = vadd.f32 %v785, 1.0
  %v787 = vrcp.pop %v786
  %v788 = vmul.f32 1.0, %v787
  %v789 = vtanh.pop %v782
  %v790 = vmul.f32 %v788, %v696
  %792 = vrot.lane.b32.xlu0 %v789, 64
  %v793 = vpop.permute.xlu0 %792
  %v795 = vmul.f32 %v788, %v793
  %797 = vrot.lane.b32.xlu0 %v795, 32
  %v798 = vpop.permute.xlu0 %797
  %v800 = vadd.f32 %v790, %v798
  %v801 = vtanh.pop %v800
  %803 = vrot.lane.b32.xlu0 %v801, 64
  %v804 = vpop.permute.xlu0 %803
  %v806 = vmul.f32 %v788, %v804
  %808 = vrot.lane.b32.xlu0 %v806, 32
  %v809 = vpop.permute.xlu0 %808
  %811 = vst.msk [vmem:[#allocation3 + $0x8] sm:$0x3] %vm394, %v809
  %v812 = vld [vmem:[#allocation2 + $0xa] sm:$0x3]
  %v813 = vadd.f32 %v812, %v191
  %v814 = vsel %vm202, %v809, 0
  %816 = vmatprep.subr.mxu0 0.0
  %817 = vmatpush1.msra.mxu0 %v286
  %818 = vmatprep.subr.mxu0 0.0
  %819 = vmatpush1.msra.mxu0 %v287
  %820 = vmatprep.subr.mxu0 0.0
  %821 = vmatpush1.msra.mxu0 %v288
  %822 = vmatprep.subr.mxu0 0.0
  %823 = vmatpush1.msra.mxu0 %v289
  %824 = vmatprep.subr.mxu0 0.0
  %825 = vmatpush1.msra.mxu0 0.0
  %826 = vmatprep.subr.mxu0 0.0
  %827 = vmatpush1.msra.mxu0 0.0
  %828 = vmatprep.subr.mxu0 0.0
  %829 = vmatpush1.msra.mxu0 0.0
  %830 = vmatprep.subr.mxu0 0.0
  %831 = vmatpush1.msra.mxu0 0.0
  %832 = vmatprep.subr.mxu0 0.0
  %833 = vmatpush1.msra.mxu0 0.0
  %834 = vmatprep.subr.mxu0 0.0
  %835 = vmatpush1.msra.mxu0 0.0
  %836 = vmatprep.subr.mxu0 0.0
  %837 = vmatpush1.msra.mxu0 0.0
  %838 = vmatprep.subr.mxu0 0.0
  %839 = vmatpush1.msra.mxu0 0.0
  %840 = vmatprep.subr.mxu0 0.0
  %841 = vmatpush1.msra.mxu0 0.0
  %842 = vmatprep.subr.mxu0 0.0
  %843 = vmatpush1.msra.mxu0 0.0
  %844 = vmatprep.subr.mxu0 0.0
  %845 = vmatpush1.msra.mxu0 0.0
  %846 = vmatprep.subr.mxu0 0.0
  %847 = vmatpush1.msra.mxu0 0.0
  %848 = vmatprep.subr.mxu0 0.0
  %849 = vmatpush1.msra.mxu0 0.0
  %850 = vmatprep.subr.mxu0 0.0
  %851 = vmatpush1.msra.mxu0 0.0
  %852 = vmatprep.subr.mxu0 0.0
  %853 = vmatpush1.msra.mxu0 0.0
  %854 = vmatprep.subr.mxu0 0.0
  %855 = vmatpush1.msra.mxu0 0.0
  %856 = vmatprep.subr.mxu0 0.0
  %857 = vmatpush1.msra.mxu0 0.0
  %858 = vmatprep.subr.mxu0 0.0
  %859 = vmatpush1.msra.mxu0 0.0
  %860 = vmatprep.subr.mxu0 0.0
  %861 = vmatpush1.msra.mxu0 0.0
  %862 = vmatprep.subr.mxu0 0.0
  %863 = vmatpush1.msra.mxu0 0.0
  %864 = vmatprep.subr.mxu0 0.0
  %865 = vmatpush1.msra.mxu0 0.0
  %866 = vmatprep.subr.mxu0 0.0
  %867 = vmatpush1.msra.mxu0 0.0
  %868 = vmatprep.subr.mxu0 0.0
  %869 = vmatpush1.msra.mxu0 0.0
  %870 = vmatprep.subr.mxu0 0.0
  %871 = vmatpush1.msra.mxu0 0.0
  %872 = vmatprep.subr.mxu0 0.0
  %873 = vmatpush1.msra.mxu0 0.0
  %874 = vmatprep.subr.mxu0 0.0
  %875 = vmatpush1.msra.mxu0 0.0
  %876 = vmatprep.subr.mxu0 0.0
  %877 = vmatpush1.msra.mxu0 0.0
  %878 = vmatprep.subr.mxu0 0.0
  %879 = vmatpush1.msra.mxu0 0.0
  %880 = vmatprep.mubr.f32.mxu0 0.0
  %881 = vmatmul.mubr.f32.gmra.mrb[0].mxu0 %v814
  %v882 = vpop.f32.mrb[0].mxu0
  %v883 = vadd.f32 0.0, %v882
  %v884 = vpop.f32.mrb[0].mxu0
  %885 = vdwg.mxu0
  %v886 = vadd.f32 %v813, %v883
  %v887 = vxor.u32 %v886, 2147483648
  %v888 = vmul.f32 %v887, 1.442695
  %v889 = vpow.pop %v888
  %v890 = vadd.f32 %v889, 1.0
  %v891 = vrcp.pop %v890
  %v892 = vmul.f32 1.0, %v891
  %v893 = vtanh.pop %v886
  %v894 = vmul.f32 %v892, %v800
  %896 = vrot.lane.b32.xlu0 %v893, 64
  %v897 = vpop.permute.xlu0 %896
  %v899 = vmul.f32 %v892, %v897
  %901 = vrot.lane.b32.xlu0 %v899, 32
  %v902 = vpop.permute.xlu0 %901
  %v904 = vadd.f32 %v894, %v902
  %v905 = vtanh.pop %v904
  %907 = vrot.lane.b32.xlu0 %v905, 64
  %v908 = vpop.permute.xlu0 %907
  %v910 = vmul.f32 %v892, %v908
  %912 = vrot.lane.b32.xlu0 %v910, 32
  %v913 = vpop.permute.xlu0 %912
  %915 = vst.msk [vmem:[#allocation3 + $0xa] sm:$0x3] %vm394, %v913
  %v916 = vld [vmem:[#allocation2 + $0xc] sm:$0x3]
  %v917 = vadd.f32 %v916, %v191
  %v918 = vsel %vm202, %v913, 0
  %920 = vmatprep.subr.mxu0 0.0
  %921 = vmatpush1.msra.mxu0 %v286
  %922 = vmatprep.subr.mxu0 0.0
  %923 = vmatpush1.msra.mxu0 %v287
  %924 = vmatprep.subr.mxu0 0.0
  %925 = vmatpush1.msra.mxu0 %v288
  %926 = vmatprep.subr.mxu0 0.0
  %927 = vmatpush1.msra.mxu0 %v289
  %928 = vmatprep.subr.mxu0 0.0
  %929 = vmatpush1.msra.mxu0 0.0
  %930 = vmatprep.subr.mxu0 0.0
  %931 = vmatpush1.msra.mxu0 0.0
  %932 = vmatprep.subr.mxu0 0.0
  %933 = vmatpush1.msra.mxu0 0.0
  %934 = vmatprep.subr.mxu0 0.0
  %935 = vmatpush1.msra.mxu0 0.0
  %936 = vmatprep.subr.mxu0 0.0
  %937 = vmatpush1.msra.mxu0 0.0
  %938 = vmatprep.subr.mxu0 0.0
  %939 = vmatpush1.msra.mxu0 0.0
  %940 = vmatprep.subr.mxu0 0.0
  %941 = vmatpush1.msra.mxu0 0.0
  %942 = vmatprep.subr.mxu0 0.0
  %943 = vmatpush1.msra.mxu0 0.0
  %944 = vmatprep.subr.mxu0 0.0
  %945 = vmatpush1.msra.mxu0 0.0
  %946 = vmatprep.subr.mxu0 0.0
  %947 = vmatpush1.msra.mxu0 0.0
  %948 = vmatprep.subr.mxu0 0.0
  %949 = vmatpush1.msra.mxu0 0.0
  %950 = vmatprep.subr.mxu0 0.0
  %951 = vmatpush1.msra.mxu0 0.0
  %952 = vmatprep.subr.mxu0 0.0
  %953 = vmatpush1.msra.mxu0 0.0
  %954 = vmatprep.subr.mxu0 0.0
  %955 = vmatpush1.msra.mxu0 0.0
  %956 = vmatprep.subr.mxu0 0.0
  %957 = vmatpush1.msra.mxu0 0.0
  %958 = vmatprep.subr.mxu0 0.0
  %959 = vmatpush1.msra.mxu0 0.0
  %960 = vmatprep.subr.mxu0 0.0
  %961 = vmatpush1.msra.mxu0 0.0
  %962 = vmatprep.subr.mxu0 0.0
  %963 = vmatpush1.msra.mxu0 0.0
  %964 = vmatprep.subr.mxu0 0.0
  %965 = vmatpush1.msra.mxu0 0.0
  %966 = vmatprep.subr.mxu0 0.0
  %967 = vmatpush1.msra.mxu0 0.0
  %968 = vmatprep.subr.mxu0 0.0
  %969 = vmatpush1.msra.mxu0 0.0
  %970 = vmatprep.subr.mxu0 0.0
  %971 = vmatpush1.msra.mxu0 0.0
  %972 = vmatprep.subr.mxu0 0.0
  %973 = vmatpush1.msra.mxu0 0.0
  %974 = vmatprep.subr.mxu0 0.0
  %975 = vmatpush1.msra.mxu0 0.0
  %976 = vmatprep.subr.mxu0 0.0
  %977 = vmatpush1.msra.mxu0 0.0
  %978 = vmatprep.subr.mxu0 0.0
  %979 = vmatpush1.msra.mxu0 0.0
  %980 = vmatprep.subr.mxu0 0.0
  %981 = vmatpush1.msra.mxu0 0.0
  %982 = vmatprep.subr.mxu0 0.0
  %983 = vmatpush1.msra.mxu0 0.0
  %984 = vmatprep.mubr.f32.mxu0 0.0
  %985 = vmatmul.mubr.f32.gmra.mrb[0].mxu0 %v918
  %v986 = vpop.f32.mrb[0].mxu0
  %v987 = vadd.f32 0.0, %v986
  %v988 = vpop.f32.mrb[0].mxu0
  %989 = vdwg.mxu0
  %v990 = vadd.f32 %v917, %v987
  %v991 = vxor.u32 %v990, 2147483648
  %v992 = vmul.f32 %v991, 1.442695
  %v993 = vpow.pop %v992
  %v994 = vadd.f32 %v993, 1.0
  %v995 = vrcp.pop %v994
  %v996 = vmul.f32 1.0, %v995
  %v997 = vtanh.pop %v990
  %v998 = vmul.f32 %v996, %v904
  %1000 = vrot.lane.b32.xlu0 %v997, 64
  %v1001 = vpop.permute.xlu0 %1000
  %v1003 = vmul.f32 %v996, %v1001
  %1005 = vrot.lane.b32.xlu0 %v1003, 32
  %v1006 = vpop.permute.xlu0 %1005
  %v1008 = vadd.f32 %v998, %v1006
  %v1009 = vtanh.pop %v1008
  %1011 = vrot.lane.b32.xlu0 %v1009, 64
  %v1012 = vpop.permute.xlu0 %1011
  %v1014 = vmul.f32 %v996, %v1012
  %1016 = vrot.lane.b32.xlu0 %v1014, 32
  %v1017 = vpop.permute.xlu0 %1016
  %1019 = vst.msk [vmem:[#allocation3 + $0xc] sm:$0x3] %vm394, %v1017
  %v1020 = vld [vmem:[#allocation2 + $0xe] sm:$0x3]
  %v1021 = vadd.f32 %v1020, %v191
  %v1022 = vsel %vm202, %v1017, 0
  %1024 = vmatprep.subr.mxu0 0.0
  %1025 = vmatpush1.msra.mxu0 %v286
  %1026 = vmatprep.subr.mxu0 0.0
  %1027 = vmatpush1.msra.mxu0 %v287
  %1028 = vmatprep.subr.mxu0 0.0
  %1029 = vmatpush1.msra.mxu0 %v288
  %1030 = vmatprep.subr.mxu0 0.0
  %1031 = vmatpush1.msra.mxu0 %v289
  %1032 = vmatprep.subr.mxu0 0.0
  %1033 = vmatpush1.msra.mxu0 0.0
  %1034 = vmatprep.subr.mxu0 0.0
  %1035 = vmatpush1.msra.mxu0 0.0
  %1036 = vmatprep.subr.mxu0 0.0
  %1037 = vmatpush1.msra.mxu0 0.0
  %1038 = vmatprep.subr.mxu0 0.0
  %1039 = vmatpush1.msra.mxu0 0.0
  %1040 = vmatprep.subr.mxu0 0.0
  %1041 = vmatpush1.msra.mxu0 0.0
  %1042 = vmatprep.subr.mxu0 0.0
  %1043 = vmatpush1.msra.mxu0 0.0
  %1044 = vmatprep.subr.mxu0 0.0
  %1045 = vmatpush1.msra.mxu0 0.0
  %1046 = vmatprep.subr.mxu0 0.0
  %1047 = vmatpush1.msra.mxu0 0.0
  %1048 = vmatprep.subr.mxu0 0.0
  %1049 = vmatpush1.msra.mxu0 0.0
  %1050 = vmatprep.subr.mxu0 0.0
  %1051 = vmatpush1.msra.mxu0 0.0
  %1052 = vmatprep.subr.mxu0 0.0
  %1053 = vmatpush1.msra.mxu0 0.0
  %1054 = vmatprep.subr.mxu0 0.0
  %1055 = vmatpush1.msra.mxu0 0.0
  %1056 = vmatprep.subr.mxu0 0.0
  %1057 = vmatpush1.msra.mxu0 0.0
  %1058 = vmatprep.subr.mxu0 0.0
  %1059 = vmatpush1.msra.mxu0 0.0
  %1060 = vmatprep.subr.mxu0 0.0
  %1061 = vmatpush1.msra.mxu0 0.0
  %1062 = vmatprep.subr.mxu0 0.0
  %1063 = vmatpush1.msra.mxu0 0.0
  %1064 = vmatprep.subr.mxu0 0.0
  %1065 = vmatpush1.msra.mxu0 0.0
  %1066 = vmatprep.subr.mxu0 0.0
  %1067 = vmatpush1.msra.mxu0 0.0
  %1068 = vmatprep.subr.mxu0 0.0
  %1069 = vmatpush1.msra.mxu0 0.0
  %1070 = vmatprep.subr.mxu0 0.0
  %1071 = vmatpush1.msra.mxu0 0.0
  %1072 = vmatprep.subr.mxu0 0.0
  %1073 = vmatpush1.msra.mxu0 0.0
  %1074 = vmatprep.subr.mxu0 0.0
  %1075 = vmatpush1.msra.mxu0 0.0
  %1076 = vmatprep.subr.mxu0 0.0
  %1077 = vmatpush1.msra.mxu0 0.0
  %1078 = vmatprep.subr.mxu0 0.0
  %1079 = vmatpush1.msra.mxu0 0.0
  %1080 = vmatprep.subr.mxu0 0.0
  %1081 = vmatpush1.msra.mxu0 0.0
  %1082 = vmatprep.subr.mxu0 0.0
  %1083 = vmatpush1.msra.mxu0 0.0
  %1084 = vmatprep.subr.mxu0 0.0
  %1085 = vmatpush1.msra.mxu0 0.0
  %1086 = vmatprep.subr.mxu0 0.0
  %1087 = vmatpush1.msra.mxu0 0.0
  %1088 = vmatprep.mubr.f32.mxu0 0.0
  %1089 = vmatmul.mubr.f32.gmra.mrb[0].mxu0 %v1022
  %v1090 = vpop.f32.mrb[0].mxu0
  %v1091 = vadd.f32 0.0, %v1090
  %v1092 = vpop.f32.mrb[0].mxu0
  %1093 = vdwg.mxu0
  %v1094 = vadd.f32 %v1021, %v1091
  %v1095 = vxor.u32 %v1094, 2147483648
  %v1096 = vmul.f32 %v1095, 1.442695
  %v1097 = vpow.pop %v1096
  %v1098 = vadd.f32 %v1097, 1.0
  %v1099 = vrcp.pop %v1098
  %v1100 = vmul.f32 1.0, %v1099
  %v1101 = vtanh.pop %v1094
  %v1102 = vmul.f32 %v1100, %v1008
  %1104 = vrot.lane.b32.xlu0 %v1101, 64
  %v1105 = vpop.permute.xlu0 %1104
  %v1107 = vmul.f32 %v1100, %v1105
  %1109 = vrot.lane.b32.xlu0 %v1107, 32
  %v1110 = vpop.permute.xlu0 %1109
  %v1112 = vadd.f32 %v1102, %v1110
  %v1113 = vtanh.pop %v1112
  %1115 = vrot.lane.b32.xlu0 %v1113, 64
  %v1116 = vpop.permute.xlu0 %1115
  %v1118 = vmul.f32 %v1100, %v1116
  %1120 = vrot.lane.b32.xlu0 %v1118, 32
  %v1121 = vpop.permute.xlu0 %1120
  %1123 = vst.msk [vmem:[#allocation3 + $0xe] sm:$0x3] %vm394, %v1121
  %v1124 = vld [vmem:[#allocation3] sm:$0xff]
  %v1125 = vld [vmem:[#allocation3 + $0x8] sm:$0xff]
  %v1126 = vld [vmem:[%s8] sm:$0xff]
  %v1127 = vld [vmem:[%s8 + $0x8] sm:$0xff]
  %v1128 = vld [vmem:[%s8 + $0x10] sm:$0xff]
  %v1129 = vld [vmem:[%s8 + $0x18] sm:$0xff]
  %v1130 = vld [vmem:[%s9] sm:$0x1]
  %v1132 = vlaneseq
  %v1133 = vshrl.u32 %v1132, 7
  %v1134 = vsub.s32 0, %v1133
  %v1135 = vrot.slane %v1130, %v1134
  %v1138 = vsel %vm202, %v1124, 0
  %v1141 = vsel %vm202, %v1125, 0
  %1143 = vmatprep.subr.mxu0 0.0
  %1144 = vmatpush1.msra.mxu0 %v1126
  %1145 = vmatprep.subr.mxu0 0.0
  %1146 = vmatpush1.msra.mxu0 %v1127
  %1147 = vmatprep.subr.mxu0 0.0
  %1148 = vmatpush1.msra.mxu0 %v1128
  %1149 = vmatprep.subr.mxu0 0.0
  %1150 = vmatpush1.msra.mxu0 %v1129
  %1151 = vmatprep.subr.mxu0 0.0
  %1152 = vmatpush1.msra.mxu0 0.0
  %1153 = vmatprep.subr.mxu0 0.0
  %1154 = vmatpush1.msra.mxu0 0.0
  %1155 = vmatprep.subr.mxu0 0.0
  %1156 = vmatpush1.msra.mxu0 0.0
  %1157 = vmatprep.subr.mxu0 0.0
  %1158 = vmatpush1.msra.mxu0 0.0
  %1159 = vmatprep.subr.mxu0 0.0
  %1160 = vmatpush1.msra.mxu0 0.0
  %1161 = vmatprep.subr.mxu0 0.0
  %1162 = vmatpush1.msra.mxu0 0.0
  %1163 = vmatprep.subr.mxu0 0.0
  %1164 = vmatpush1.msra.mxu0 0.0
  %1165 = vmatprep.subr.mxu0 0.0
  %1166 = vmatpush1.msra.mxu0 0.0
  %1167 = vmatprep.subr.mxu0 0.0
  %1168 = vmatpush1.msra.mxu0 0.0
  %1169 = vmatprep.subr.mxu0 0.0
  %1170 = vmatpush1.msra.mxu0 0.0
  %1171 = vmatprep.subr.mxu0 0.0
  %1172 = vmatpush1.msra.mxu0 0.0
  %1173 = vmatprep.subr.mxu0 0.0
  %1174 = vmatpush1.msra.mxu0 0.0
  %1175 = vmatprep.subr.mxu0 0.0
  %1176 = vmatpush1.msra.mxu0 0.0
  %1177 = vmatprep.subr.mxu0 0.0
  %1178 = vmatpush1.msra.mxu0 0.0
  %1179 = vmatprep.subr.mxu0 0.0
  %1180 = vmatpush1.msra.mxu0 0.0
  %1181 = vmatprep.subr.mxu0 0.0
  %1182 = vmatpush1.msra.mxu0 0.0
  %1183 = vmatprep.subr.mxu0 0.0
  %1184 = vmatpush1.msra.mxu0 0.0
  %1185 = vmatprep.subr.mxu0 0.0
  %1186 = vmatpush1.msra.mxu0 0.0
  %1187 = vmatprep.subr.mxu0 0.0
  %1188 = vmatpush1.msra.mxu0 0.0
  %1189 = vmatprep.subr.mxu0 0.0
  %1190 = vmatpush1.msra.mxu0 0.0
  %1191 = vmatprep.subr.mxu0 0.0
  %1192 = vmatpush1.msra.mxu0 0.0
  %1193 = vmatprep.subr.mxu0 0.0
  %1194 = vmatpush1.msra.mxu0 0.0
  %1195 = vmatprep.subr.mxu0 0.0
  %1196 = vmatpush1.msra.mxu0 0.0
  %1197 = vmatprep.subr.mxu0 0.0
  %1198 = vmatpush1.msra.mxu0 0.0
  %1199 = vmatprep.subr.mxu0 0.0
  %1200 = vmatpush1.msra.mxu0 0.0
  %1201 = vmatprep.subr.mxu0 0.0
  %1202 = vmatpush1.msra.mxu0 0.0
  %1203 = vmatprep.subr.mxu0 0.0
  %1204 = vmatpush1.msra.mxu0 0.0
  %1205 = vmatprep.subr.mxu0 0.0
  %1206 = vmatpush1.msra.mxu0 0.0
  %1207 = vmatprep.mubr.f32.mxu0 0.0
  %1208 = vmatmul.mubr.f32.gmra.mrb[0].mxu0 %v1138
  %v1209 = vpop.f32.mrb[0].mxu0
  %v1210 = vadd.f32 %v1135, %v1209
  %v1211 = vpop.f32.mrb[0].mxu0
  %1212 = vmatprep.mubr.f32.mxu0 0.0
  %1213 = vmatmul.mubr.f32.gmra.mrb[0].mxu0 %v1141
  %v1214 = vpop.f32.mrb[0].mxu0
  %v1215 = vadd.f32 %v1135, %v1214
  %v1216 = vpop.f32.mrb[0].mxu0
  %1217 = vdwg.mxu0
  %1218 = vst [vmem:[%s10] sm:$0xff] %v1210
  %1219 = vst [vmem:[%s10 + $0x8] sm:$0xff] %v1215
  // Predicated region
  $region42: #{baseline_decoder_forward.1} parent=0 // pred_check
    _
  $region43: #{baseline_decoder_forward.1} parent=0 // pred_check_branch
    %1221 = sbr.rel (0) target = $region45
  $region44: #{baseline_decoder_forward.1} parent=0 // pred_region
    _
  $region45: #{baseline_decoder_forward.1} parent=0 // pred_fallthru
    _
  // Predicated region
  $region46: #{baseline_decoder_forward.1} parent=0 // pred_check
    _
  $region47: #{baseline_decoder_forward.1} parent=0 // pred_check_branch
    %1223 = sbr.rel (0) target = $region49
  $region48: #{baseline_decoder_forward.1} parent=0 // pred_region
    _
  $region49: #{baseline_decoder_forward.1} parent=0 // pred_fallthru
    _

</llo_original>
